<compile_context>
chip_gen: v7x
topology: tpu7x:2x2x1
jax: 0.10.0
libtpu: 0.0.40
codegen_flags: <defaults>
</compile_context>

<pallas_src>
import jax
import jax.numpy as jnp
from jax.experimental import pallas as pl
from jax.experimental.pallas import tpu as pltpu

LN_EPS = 1e-5  # PyTorch nn.LayerNorm default


def mlp_resnet_block_kernel(x_ref, gamma_ref, beta_ref, w1_ref, b1_ref,
                            w2_ref, b2_ref, o_ref):
    x = x_ref[...].astype(jnp.float32)

    # LayerNorm over the feature (last) dim, gamma folded into the rsqrt scale.
    mean = jnp.mean(x, axis=-1, keepdims=True)
    var = jnp.mean(jnp.square(x - mean), axis=-1, keepdims=True)
    scale = gamma_ref[...] * jax.lax.rsqrt(var + LN_EPS)     # (1, D) * (tm, 1)
    xn = (x - mean) * scale + beta_ref[...]

    # dense1 -> ReLU -> dense2: weights arrive pre-cast to bf16, f32 accumulation.
    h = jnp.dot(xn.astype(jnp.bfloat16), w1_ref[...],
                preferred_element_type=jnp.float32) + b1_ref[...]
    h = jnp.maximum(h, 0.0)                                  # act = ReLU
    y = jnp.dot(h.astype(jnp.bfloat16), w2_ref[...],
                preferred_element_type=jnp.float32) + b2_ref[...]

    # Residual add (in_dim == out_dim => shapes match). Re-read the resident x tile
    # rather than keeping it live across both matmuls.
    o_ref[...] = (x_ref[...].astype(jnp.float32) + y).astype(o_ref.dtype)


def _pick_tm(n_rows: int) -> int:
    """Batch tile: multiple of 8, <=512, aiming for >=4 grid steps when possible."""
    if n_rows <= 8:
        return n_rows  # full-array block is always legal
    target = max(8, min(512, n_rows // 4))
    target = (target // 8) * 8
    tm = target
    while tm > 8 and n_rows % tm != 0:
        tm -= 8
    if tm < 8 or n_rows % tm != 0:
        # No aligned divisor: fall back to one full-array tile (legal block shape).
        return n_rows
    return tm


def _vmem_limit_bytes(resident_estimate: int) -> int:
    """Per-generation scoped-VMEM request with ~25% headroom for transients."""
    cap = 128 * 1024 * 1024  # v5e/v6e physical VMEM (fallback)
    try:
        info = pltpu.get_tpu_info()
        cap = int(getattr(info, "vmem_capacity_bytes", cap)) or cap
    except Exception:
        pass
    ceiling = int(cap * 0.75)            # ~48 MiB on v7x, ~96 MiB on v5e/v6e
    want = max(32 * 1024 * 1024, int(1.5 * resident_estimate))
    return min(want, ceiling)


def _build_call(N, D, H, O, tm, out_dtype, *, single_buffer_weights, vmem_limit):
    if single_buffer_weights:
        def const_spec(shape):
            return pl.BlockSpec(shape, lambda i: (0, 0),
                                pipeline_mode=pl.Buffered(1))
    else:
        def const_spec(shape):
            return pl.BlockSpec(shape, lambda i: (0, 0))

    return pl.pallas_call(
        mlp_resnet_block_kernel,
        out_shape=jax.ShapeDtypeStruct((N, O), out_dtype),
        grid_spec=pltpu.PrefetchScalarGridSpec(
            num_scalar_prefetch=0,
            grid=(N // tm,),
            in_specs=[
                pl.BlockSpec((tm, D), lambda i: (i, 0)),   # x tile (pipelined)
                const_spec((1, D)),                        # ln gamma
                const_spec((1, D)),                        # ln beta
                const_spec((D, H)),                        # W1 (in, hidden), bf16, resident
                const_spec((1, H)),                        # b1
                const_spec((H, O)),                        # W2 (hidden, out), bf16, resident
                const_spec((1, O)),                        # b2
            ],
            out_specs=pl.BlockSpec((tm, O), lambda i: (i, 0)),
        ),
        compiler_params=pltpu.CompilerParams(
            dimension_semantics=("parallel",),
            vmem_limit_bytes=vmem_limit,
        ),
    )


def mlp_resnet_block(x, gamma, beta, w1, b1, w2, b2, *, tm=None):
    N, D = x.shape
    H = w1.shape[1]
    O = w2.shape[1]
    assert D == O, "residual re-projection (in_dim != out_dim) not implemented"
    if tm is None:
        tm = _pick_tm(N)
    assert N % tm == 0

    # Pre-cast weights to bf16 once in the wrapper (halves DMA + resident VMEM,
    # removes per-step VPU casts); biases / LN params stay f32.
    w1 = w1.astype(jnp.bfloat16)
    w2 = w2.astype(jnp.bfloat16)

    # Resident-VMEM estimate: double-buffered activation/output tiles (f32),
    # single-buffered bf16 weights + f32 small vectors.
    vmem_bytes = (
        2 * (tm * D + tm * O) * 4
        + (D * H + H * O) * 2
        + (2 * D + H + O) * 4
    )
    vmem_limit = _vmem_limit_bytes(vmem_bytes)

    args = (x, gamma, beta, w1, b1, w2, b2)
    try:
        out = _build_call(N, D, H, O, tm, x.dtype,
                          single_buffer_weights=True, vmem_limit=vmem_limit)(*args)
        return jax.block_until_ready(out)
    except Exception:
        # Fallback if this runtime rejects pipeline_mode=pl.Buffered(1).
        out = _build_call(N, D, H, O, tm, x.dtype,
                          single_buffer_weights=False, vmem_limit=vmem_limit)(*args)
        return jax.block_until_ready(out)


def reference_forward_f32(x, gamma, beta, w1, b1, w2, b2):
    """Exact f32 semantics of the PyTorch module (LayerNorm -> MLP + residual)."""
    residual = x
    mean = jnp.mean(x, axis=-1, keepdims=True)
    var = jnp.mean((x - mean) ** 2, axis=-1, keepdims=True)
    xn = (x - mean) / jnp.sqrt(var + LN_EPS) * gamma + beta
    h = jnp.maximum(xn @ w1 + b1, 0.0)
    y = h @ w2 + b2
    return residual + y


def reference_forward_bf16_matmul(x, gamma, beta, w1, b1, w2, b2):
    """Reference with the same bf16-operand / f32-accum matmuls as the kernel."""
    residual = x
    mean = jnp.mean(x, axis=-1, keepdims=True)
    var = jnp.mean((x - mean) ** 2, axis=-1, keepdims=True)
    xn = (x - mean) * jax.lax.rsqrt(var + LN_EPS) * gamma + beta
    h = jnp.dot(xn.astype(jnp.bfloat16), w1.astype(jnp.bfloat16),
                preferred_element_type=jnp.float32) + b1
    h = jnp.maximum(h, 0.0)
    y = jnp.dot(h.astype(jnp.bfloat16), w2.astype(jnp.bfloat16),
                preferred_element_type=jnp.float32) + b2
    return residual + y


if __name__ == "__main__":
    # Lane-dense shapes: feature dims are multiples of 128; batch=256 -> tm=64,
    # grid=(4,) so both v7x TensorCores get work and the pipeline has depth.
    batch = 256
    in_dim = 128
    hidden_dim = 256
    out_dim = 128  # == in_dim so the residual adds directly

    key = jax.random.PRNGKey(0)
    kx, k1, k2, k3, k4 = jax.random.split(key, 5)

    x = jax.random.normal(kx, (batch, in_dim), dtype=jnp.float32)

    # Deterministic synthetic parameters (PyTorch-like scale), weights pre-transposed
    # to (in, out).
    w1 = jax.random.normal(k1, (in_dim, hidden_dim), jnp.float32) / jnp.sqrt(in_dim)
    b1 = jax.random.normal(k2, (1, hidden_dim), jnp.float32) * 0.01
    w2 = jax.random.normal(k3, (hidden_dim, out_dim), jnp.float32) / jnp.sqrt(hidden_dim)
    b2 = jax.random.normal(k4, (1, out_dim), jnp.float32) * 0.01
    gamma = jnp.ones((1, in_dim), jnp.float32)
    beta = jnp.zeros((1, in_dim), jnp.float32)

    out = mlp_resnet_block(x, gamma, beta, w1, b1, w2, b2)
    out = jax.block_until_ready(out)
    assert out.shape == (batch, out_dim)

    # Tight check against a precision-matched reference (same bf16 matmul path).
    ref_matched = reference_forward_bf16_matmul(x, gamma, beta, w1, b1, w2, b2)
    assert jnp.allclose(out, ref_matched, atol=2e-3, rtol=2e-3), (
        float(jnp.max(jnp.abs(out - ref_matched))))

    # Loose check against the exact f32 module semantics (bf16 operand rounding only).
    ref_f32 = reference_forward_f32(x, gamma, beta, w1, b1, w2, b2)
    assert jnp.allclose(out, ref_f32, atol=1e-1, rtol=1e-1), (
        float(jnp.max(jnp.abs(out - ref_f32))))

    print("KERNEL_OK")
</pallas_src>

<mosaic_0001>
module attributes {stable_mosaic.version = 11 : i64} {
  func.func @mlp_resnet_block_kernel(%arg0: i32, %arg1: memref<64x128xf32, #tpu.memory_space<vmem>>, %arg2: memref<1x128xf32, #tpu.memory_space<vmem>>, %arg3: memref<1x128xf32, #tpu.memory_space<vmem>>, %arg4: memref<128x256xbf16, #tpu.memory_space<vmem>>, %arg5: memref<1x256xf32, #tpu.memory_space<vmem>>, %arg6: memref<256x128xbf16, #tpu.memory_space<vmem>>, %arg7: memref<1x128xf32, #tpu.memory_space<vmem>>, %arg8: memref<64x128xf32, #tpu.memory_space<vmem>>) attributes {dimension_semantics = [#tpu.dimension_semantics<parallel>], iteration_bounds = array<i64: 4>, scalar_prefetch = 0 : i64, scratch_operands = 0 : i64, tpu.core_type = #tpu.core_type<tc>, window_params = [{transform_indices = @transform_0, window_bounds = array<i64: 64, 128>}, {pipeline_mode = #tpu.pipeline_mode<synchronous>, transform_indices = @transform_1, window_bounds = array<i64: 1, 128>}, {pipeline_mode = #tpu.pipeline_mode<synchronous>, transform_indices = @transform_2, window_bounds = array<i64: 1, 128>}, {pipeline_mode = #tpu.pipeline_mode<synchronous>, transform_indices = @transform_3, window_bounds = array<i64: 128, 256>}, {pipeline_mode = #tpu.pipeline_mode<synchronous>, transform_indices = @transform_4, window_bounds = array<i64: 1, 256>}, {pipeline_mode = #tpu.pipeline_mode<synchronous>, transform_indices = @transform_5, window_bounds = array<i64: 256, 128>}, {pipeline_mode = #tpu.pipeline_mode<synchronous>, transform_indices = @transform_6, window_bounds = array<i64: 1, 128>}, {transform_indices = @transform_7, window_bounds = array<i64: 64, 128>}]} {
    %c0 = arith.constant 0 : index
    %c0_0 = arith.constant 0 : index
    %0 = vector.load %arg1[%c0, %c0_0] : memref<64x128xf32, #tpu.memory_space<vmem>>, vector<64x128xf32>
    %cst = arith.constant dense<0.000000e+00> : vector<64xf32>
    %1 = vector.multi_reduction <add>, %0, %cst [1] : vector<64x128xf32> to vector<64xf32>
    %2 = vector.shape_cast %1 : vector<64xf32> to vector<64x1xf32>
    %cst_1 = arith.constant 1.280000e+02 : f32
    %3 = vector.broadcast %cst_1 : f32 to vector<64x1xf32>
    %4 = arith.divf %2, %3 : vector<64x1xf32>
    %5 = vector.broadcast %4 : vector<64x1xf32> to vector<64x128xf32>
    %6 = arith.subf %0, %5 : vector<64x128xf32>
    %7 = arith.mulf %6, %6 : vector<64x128xf32>
    %cst_2 = arith.constant dense<0.000000e+00> : vector<64xf32>
    %8 = vector.multi_reduction <add>, %7, %cst_2 [1] : vector<64x128xf32> to vector<64xf32>
    %9 = vector.shape_cast %8 : vector<64xf32> to vector<64x1xf32>
    %cst_3 = arith.constant 1.280000e+02 : f32
    %10 = vector.broadcast %cst_3 : f32 to vector<64x1xf32>
    %11 = arith.divf %9, %10 : vector<64x1xf32>
    %c0_4 = arith.constant 0 : index
    %c0_5 = arith.constant 0 : index
    %12 = vector.load %arg2[%c0_4, %c0_5] : memref<1x128xf32, #tpu.memory_space<vmem>>, vector<1x128xf32>
    %cst_6 = arith.constant 9.99999974E-6 : f32
    %13 = vector.broadcast %cst_6 : f32 to vector<64x1xf32>
    %14 = arith.addf %11, %13 : vector<64x1xf32>
    %15 = math.rsqrt %14 : vector<64x1xf32>
    %16 = vector.broadcast %12 : vector<1x128xf32> to vector<64x128xf32>
    %17 = vector.broadcast %15 : vector<64x1xf32> to vector<64x128xf32>
    %18 = arith.mulf %16, %17 : vector<64x128xf32>
    %19 = vector.broadcast %4 : vector<64x1xf32> to vector<64x128xf32>
    %20 = arith.subf %0, %19 : vector<64x128xf32>
    %21 = arith.mulf %20, %18 : vector<64x128xf32>
    %c0_7 = arith.constant 0 : index
    %c0_8 = arith.constant 0 : index
    %22 = vector.load %arg3[%c0_7, %c0_8] : memref<1x128xf32, #tpu.memory_space<vmem>>, vector<1x128xf32>
    %23 = vector.broadcast %22 : vector<1x128xf32> to vector<64x128xf32>
    %24 = arith.addf %21, %23 : vector<64x128xf32>
    %25 = arith.truncf %24 : vector<64x128xf32> to vector<64x128xbf16>
    %c0_9 = arith.constant 0 : index
    %c0_10 = arith.constant 0 : index
    %26 = vector.load %arg4[%c0_9, %c0_10] : memref<128x256xbf16, #tpu.memory_space<vmem>>, vector<128x256xbf16>
    %cst_11 = arith.constant dense<0.000000e+00> : vector<64x256xf32>
    %27 = tpu.matmul %25, %26, %cst_11 {dimension_numbers = #tpu.dot_dimension_numbers<[1], [0], [0], [1], [0, 0, 1, 1], [], []>} : vector<64x128xbf16>, vector<128x256xbf16>, vector<64x256xf32> -> vector<64x256xf32>
    %c0_12 = arith.constant 0 : index
    %c0_13 = arith.constant 0 : index
    %28 = vector.load %arg5[%c0_12, %c0_13] : memref<1x256xf32, #tpu.memory_space<vmem>>, vector<1x256xf32>
    %29 = vector.broadcast %28 : vector<1x256xf32> to vector<64x256xf32>
    %30 = arith.addf %27, %29 : vector<64x256xf32>
    %cst_14 = arith.constant 0.000000e+00 : f32
    %31 = vector.broadcast %cst_14 : f32 to vector<64x256xf32>
    %32 = arith.maximumf %30, %31 : vector<64x256xf32>
    %33 = arith.truncf %32 : vector<64x256xf32> to vector<64x256xbf16>
    %c0_15 = arith.constant 0 : index
    %c0_16 = arith.constant 0 : index
    %34 = vector.load %arg6[%c0_15, %c0_16] : memref<256x128xbf16, #tpu.memory_space<vmem>>, vector<256x128xbf16>
    %cst_17 = arith.constant dense<0.000000e+00> : vector<64x128xf32>
    %35 = tpu.matmul %33, %34, %cst_17 {dimension_numbers = #tpu.dot_dimension_numbers<[1], [0], [0], [1], [0, 0, 1, 1], [], []>} : vector<64x256xbf16>, vector<256x128xbf16>, vector<64x128xf32> -> vector<64x128xf32>
    %c0_18 = arith.constant 0 : index
    %c0_19 = arith.constant 0 : index
    %36 = vector.load %arg7[%c0_18, %c0_19] : memref<1x128xf32, #tpu.memory_space<vmem>>, vector<1x128xf32>
    %37 = vector.broadcast %36 : vector<1x128xf32> to vector<64x128xf32>
    %38 = arith.addf %35, %37 : vector<64x128xf32>
    %c0_20 = arith.constant 0 : index
    %c0_21 = arith.constant 0 : index
    %39 = vector.load %arg1[%c0_20, %c0_21] : memref<64x128xf32, #tpu.memory_space<vmem>>, vector<64x128xf32>
    %40 = arith.addf %39, %38 : vector<64x128xf32>
    %c0_22 = arith.constant 0 : index
    %c0_23 = arith.constant 0 : index
    %41 = vector.load %arg8[%c0_22, %c0_23] : memref<64x128xf32, #tpu.memory_space<vmem>>, vector<64x128xf32>
    tpu.vector_store %arg8[%c0_22, %c0_23], %40 {strides = array<i32>} : memref<64x128xf32, #tpu.memory_space<vmem>>, vector<64x128xf32>,
    return
  }
  func.func @transform_0(%arg0: i32) -> (i32, i32) {
    %c0_i32 = arith.constant 0 : i32
    %c0_i32_0 = arith.constant 0 : i32
    return %arg0, %c0_i32 : i32, i32
  }
  func.func @transform_1(%arg0: i32) -> (i32, i32) {
    %c0_i32 = arith.constant 0 : i32
    %c0_i32_0 = arith.constant 0 : i32
    %c0_i32_1 = arith.constant 0 : i32
    return %c0_i32, %c0_i32_0 : i32, i32
  }
  func.func @transform_2(%arg0: i32) -> (i32, i32) {
    %c0_i32 = arith.constant 0 : i32
    %c0_i32_0 = arith.constant 0 : i32
    %c0_i32_1 = arith.constant 0 : i32
    return %c0_i32, %c0_i32_0 : i32, i32
  }
  func.func @transform_3(%arg0: i32) -> (i32, i32) {
    %c0_i32 = arith.constant 0 : i32
    %c0_i32_0 = arith.constant 0 : i32
    %c0_i32_1 = arith.constant 0 : i32
    return %c0_i32, %c0_i32_0 : i32, i32
  }
  func.func @transform_4(%arg0: i32) -> (i32, i32) {
    %c0_i32 = arith.constant 0 : i32
    %c0_i32_0 = arith.constant 0 : i32
    %c0_i32_1 = arith.constant 0 : i32
    return %c0_i32, %c0_i32_0 : i32, i32
  }
  func.func @transform_5(%arg0: i32) -> (i32, i32) {
    %c0_i32 = arith.constant 0 : i32
    %c0_i32_0 = arith.constant 0 : i32
    %c0_i32_1 = arith.constant 0 : i32
    return %c0_i32, %c0_i32_0 : i32, i32
  }
  func.func @transform_6(%arg0: i32) -> (i32, i32) {
    %c0_i32 = arith.constant 0 : i32
    %c0_i32_0 = arith.constant 0 : i32
    %c0_i32_1 = arith.constant 0 : i32
    return %c0_i32, %c0_i32_0 : i32, i32
  }
  func.func @transform_7(%arg0: i32) -> (i32, i32) {
    %c0_i32 = arith.constant 0 : i32
    %c0_i32_0 = arith.constant 0 : i32
    return %arg0, %c0_i32 : i32, i32
  }
}

module attributes {stable_mosaic.version = 11 : i64} {
  func.func @mlp_resnet_block_kernel(%arg0: i32, %arg1: memref<64x128xf32, #tpu.memory_space<vmem>>, %arg2: memref<1x128xf32, #tpu.memory_space<vmem>>, %arg3: memref<1x128xf32, #tpu.memory_space<vmem>>, %arg4: memref<128x256xbf16, #tpu.memory_space<vmem>>, %arg5: memref<1x256xf32, #tpu.memory_space<vmem>>, %arg6: memref<256x128xbf16, #tpu.memory_space<vmem>>, %arg7: memref<1x128xf32, #tpu.memory_space<vmem>>, %arg8: memref<64x128xf32, #tpu.memory_space<vmem>>) attributes {dimension_semantics = [#tpu.dimension_semantics<parallel>], iteration_bounds = array<i64: 4>, scalar_prefetch = 0 : i64, scratch_operands = 0 : i64, tpu.core_type = #tpu.core_type<tc>, window_params = [{transform_indices = @transform_0, window_bounds = array<i64: 64, 128>}, {pipeline_mode = #tpu.pipeline_mode<synchronous>, transform_indices = @transform_1, window_bounds = array<i64: 1, 128>}, {pipeline_mode = #tpu.pipeline_mode<synchronous>, transform_indices = @transform_2, window_bounds = array<i64: 1, 128>}, {pipeline_mode = #tpu.pipeline_mode<synchronous>, transform_indices = @transform_3, window_bounds = array<i64: 128, 256>}, {pipeline_mode = #tpu.pipeline_mode<synchronous>, transform_indices = @transform_4, window_bounds = array<i64: 1, 256>}, {pipeline_mode = #tpu.pipeline_mode<synchronous>, transform_indices = @transform_5, window_bounds = array<i64: 256, 128>}, {pipeline_mode = #tpu.pipeline_mode<synchronous>, transform_indices = @transform_6, window_bounds = array<i64: 1, 128>}, {transform_indices = @transform_7, window_bounds = array<i64: 64, 128>}]} {
    %c0 = arith.constant 0 : index
    %c0_0 = arith.constant 0 : index
    %0 = vector.load %arg1[%c0, %c0_0] : memref<64x128xf32, #tpu.memory_space<vmem>>, vector<64x128xf32>
    %cst = arith.constant dense<0.000000e+00> : vector<64xf32>
    %1 = vector.multi_reduction <add>, %0, %cst [1] : vector<64x128xf32> to vector<64xf32>
    %2 = vector.shape_cast %1 : vector<64xf32> to vector<64x1xf32>
    %cst_1 = arith.constant 1.280000e+02 : f32
    %3 = vector.broadcast %cst_1 : f32 to vector<64x1xf32>
    %4 = arith.divf %2, %3 : vector<64x1xf32>
    %5 = vector.broadcast %4 : vector<64x1xf32> to vector<64x128xf32>
    %6 = arith.subf %0, %5 : vector<64x128xf32>
    %7 = arith.mulf %6, %6 : vector<64x128xf32>
    %cst_2 = arith.constant dense<0.000000e+00> : vector<64xf32>
    %8 = vector.multi_reduction <add>, %7, %cst_2 [1] : vector<64x128xf32> to vector<64xf32>
    %9 = vector.shape_cast %8 : vector<64xf32> to vector<64x1xf32>
    %cst_3 = arith.constant 1.280000e+02 : f32
    %10 = vector.broadcast %cst_3 : f32 to vector<64x1xf32>
    %11 = arith.divf %9, %10 : vector<64x1xf32>
    %c0_4 = arith.constant 0 : index
    %c0_5 = arith.constant 0 : index
    %12 = vector.load %arg2[%c0_4, %c0_5] : memref<1x128xf32, #tpu.memory_space<vmem>>, vector<1x128xf32>
    %cst_6 = arith.constant 9.99999974E-6 : f32
    %13 = vector.broadcast %cst_6 : f32 to vector<64x1xf32>
    %14 = arith.addf %11, %13 : vector<64x1xf32>
    %15 = math.rsqrt %14 : vector<64x1xf32>
    %16 = vector.broadcast %12 : vector<1x128xf32> to vector<64x128xf32>
    %17 = vector.broadcast %15 : vector<64x1xf32> to vector<64x128xf32>
    %18 = arith.mulf %16, %17 : vector<64x128xf32>
    %19 = vector.broadcast %4 : vector<64x1xf32> to vector<64x128xf32>
    %20 = arith.subf %0, %19 : vector<64x128xf32>
    %21 = arith.mulf %20, %18 : vector<64x128xf32>
    %c0_7 = arith.constant 0 : index
    %c0_8 = arith.constant 0 : index
    %22 = vector.load %arg3[%c0_7, %c0_8] : memref<1x128xf32, #tpu.memory_space<vmem>>, vector<1x128xf32>
    %23 = vector.broadcast %22 : vector<1x128xf32> to vector<64x128xf32>
    %24 = arith.addf %21, %23 : vector<64x128xf32>
    %25 = arith.truncf %24 : vector<64x128xf32> to vector<64x128xbf16>
    %c0_9 = arith.constant 0 : index
    %c0_10 = arith.constant 0 : index
    %26 = vector.load %arg4[%c0_9, %c0_10] : memref<128x256xbf16, #tpu.memory_space<vmem>>, vector<128x256xbf16>
    %cst_11 = arith.constant dense<0.000000e+00> : vector<64x256xf32>
    %27 = tpu.matmul %25, %26, %cst_11 {dimension_numbers = #tpu.dot_dimension_numbers<[1], [0], [0], [1], [0, 0, 1, 1], [], []>} : vector<64x128xbf16>, vector<128x256xbf16>, vector<64x256xf32> -> vector<64x256xf32>
    %c0_12 = arith.constant 0 : index
    %c0_13 = arith.constant 0 : index
    %28 = vector.load %arg5[%c0_12, %c0_13] : memref<1x256xf32, #tpu.memory_space<vmem>>, vector<1x256xf32>
    %29 = vector.broadcast %28 : vector<1x256xf32> to vector<64x256xf32>
    %30 = arith.addf %27, %29 : vector<64x256xf32>
    %cst_14 = arith.constant 0.000000e+00 : f32
    %31 = vector.broadcast %cst_14 : f32 to vector<64x256xf32>
    %32 = arith.maximumf %30, %31 : vector<64x256xf32>
    %33 = arith.truncf %32 : vector<64x256xf32> to vector<64x256xbf16>
    %c0_15 = arith.constant 0 : index
    %c0_16 = arith.constant 0 : index
    %34 = vector.load %arg6[%c0_15, %c0_16] : memref<256x128xbf16, #tpu.memory_space<vmem>>, vector<256x128xbf16>
    %cst_17 = arith.constant dense<0.000000e+00> : vector<64x128xf32>
    %35 = tpu.matmul %33, %34, %cst_17 {dimension_numbers = #tpu.dot_dimension_numbers<[1], [0], [0], [1], [0, 0, 1, 1], [], []>} : vector<64x256xbf16>, vector<256x128xbf16>, vector<64x128xf32> -> vector<64x128xf32>
    %c0_18 = arith.constant 0 : index
    %c0_19 = arith.constant 0 : index
    %36 = vector.load %arg7[%c0_18, %c0_19] : memref<1x128xf32, #tpu.memory_space<vmem>>, vector<1x128xf32>
    %37 = vector.broadcast %36 : vector<1x128xf32> to vector<64x128xf32>
    %38 = arith.addf %35, %37 : vector<64x128xf32>
    %c0_20 = arith.constant 0 : index
    %c0_21 = arith.constant 0 : index
    %39 = vector.load %arg1[%c0_20, %c0_21] : memref<64x128xf32, #tpu.memory_space<vmem>>, vector<64x128xf32>
    %40 = arith.addf %39, %38 : vector<64x128xf32>
    %c0_22 = arith.constant 0 : index
    %c0_23 = arith.constant 0 : index
    %41 = vector.load %arg8[%c0_22, %c0_23] : memref<64x128xf32, #tpu.memory_space<vmem>>, vector<64x128xf32>
    tpu.vector_store %arg8[%c0_22, %c0_23], %40 {strides = array<i32>} : memref<64x128xf32, #tpu.memory_space<vmem>>, vector<64x128xf32>,
    return
  }
  func.func @transform_0(%arg0: i32) -> (i32, i32) {
    %c0_i32 = arith.constant 0 : i32
    %c0_i32_0 = arith.constant 0 : i32
    return %arg0, %c0_i32 : i32, i32
  }
  func.func @transform_1(%arg0: i32) -> (i32, i32) {
    %c0_i32 = arith.constant 0 : i32
    %c0_i32_0 = arith.constant 0 : i32
    %c0_i32_1 = arith.constant 0 : i32
    return %c0_i32, %c0_i32_0 : i32, i32
  }
  func.func @transform_2(%arg0: i32) -> (i32, i32) {
    %c0_i32 = arith.constant 0 : i32
    %c0_i32_0 = arith.constant 0 : i32
    %c0_i32_1 = arith.constant 0 : i32
    return %c0_i32, %c0_i32_0 : i32, i32
  }
  func.func @transform_3(%arg0: i32) -> (i32, i32) {
    %c0_i32 = arith.constant 0 : i32
    %c0_i32_0 = arith.constant 0 : i32
    %c0_i32_1 = arith.constant 0 : i32
    return %c0_i32, %c0_i32_0 : i32, i32
  }
  func.func @transform_4(%arg0: i32) -> (i32, i32) {
    %c0_i32 = arith.constant 0 : i32
    %c0_i32_0 = arith.constant 0 : i32
    %c0_i32_1 = arith.constant 0 : i32
    return %c0_i32, %c0_i32_0 : i32, i32
  }
  func.func @transform_5(%arg0: i32) -> (i32, i32) {
    %c0_i32 = arith.constant 0 : i32
    %c0_i32_0 = arith.constant 0 : i32
    %c0_i32_1 = arith.constant 0 : i32
    return %c0_i32, %c0_i32_0 : i32, i32
  }
  func.func @transform_6(%arg0: i32) -> (i32, i32) {
    %c0_i32 = arith.constant 0 : i32
    %c0_i32_0 = arith.constant 0 : i32
    %c0_i32_1 = arith.constant 0 : i32
    return %c0_i32, %c0_i32_0 : i32, i32
  }
  func.func @transform_7(%arg0: i32) -> (i32, i32) {
    %c0_i32 = arith.constant 0 : i32
    %c0_i32_0 = arith.constant 0 : i32
    return %arg0, %c0_i32 : i32, i32
  }
}

</mosaic_0001>

<llo_original>
// kernel: tpu_custom_call.1
$region0: #{tpu_custom_call.1}
  #allocation0 [shape = 'u32[]', space=smem, size = 0x4, offset = 0x4, fixed_abs, tag = 'smem constant byte address 0x4 - core index']
  #allocation1 [shape = 'u32[144,128]{1,0:T(1,128)}', space=vmem, size = 0x12000, scoped, tag = 'internal scratch']
  %s0 = inlined_call_operand.hbm [shape: f32[256,128], index: 0, kind: input, shape index: {}]
  %s1 = inlined_call_operand.vmem [shape: f32[1,128], index: 1, kind: input, shape index: {}]
  %s2 = inlined_call_operand.vmem [shape: f32[1,128], index: 2, kind: input, shape index: {}]
  %s3 = inlined_call_operand.hbm [shape: bf16[128,256], index: 3, kind: input, shape index: {}]
  %s4 = inlined_call_operand.vmem [shape: f32[1,256], index: 4, kind: input, shape index: {}]
  %s5 = inlined_call_operand.hbm [shape: bf16[256,128], index: 5, kind: input, shape index: {}]
  %s6 = inlined_call_operand.vmem [shape: f32[1,128], index: 6, kind: input, shape index: {}]
  %s7 = inlined_call_operand.hbm [shape: f32[256,128], index: 7, kind: output, shape index: {}]
  %s8 = sld [smem:[#allocation0]]
  $region73: #{tpu_custom_call.1} parent=0
    _
  %s10 = ssub.s32 1, %s8
  %s11 = scalar_select 0, %s10, %s8
  $region1: #{tpu_custom_call.1} parent=0
    #allocation2 [shape = 'u8[65536]{0}', space=vmem, size = 0x10000, scoped, tag = 'input window, operand 0']
    #allocation3 [shape = 's32[2]{0}', space=sflag, size = 0x8, scoped, tag = 'scoped memory for tpu_custom_call.1']
    #allocation4 [shape = 's32[2]{0}', space=sflag, size = 0x8, scoped, tag = 'scoped memory for tpu_custom_call.1']
    #allocation5 [shape = 'u8[65536]{0}', space=vmem, size = 0x10000, scoped, tag = 'input window, operand 3, single buffered']
    #allocation6 [shape = 's32[1]{0}', space=sflag, size = 0x4, scoped, tag = 'scoped memory for tpu_custom_call.1']
    #allocation7 [shape = 'u8[65536]{0}', space=vmem, size = 0x10000, scoped, tag = 'input window, operand 5, single buffered']
    #allocation8 [shape = 'u8[65536]{0}', space=vmem, size = 0x10000, scoped, tag = 'output window, operand 0']
    %12 = vsyncpa [#allocation3], 0
    %s13 = scalar_lea.sflag [#allocation3], 1
    %14 = vsyncpa %s13, 0
    %15 = vsyncpa [#allocation6], 0
    %16 = vsyncpa [#allocation4], 0
    %s17 = scalar_lea.sflag [#allocation4], 1
    %18 = vsyncpa %s17, 0
    loop: start=0, step=1, limit=6
    $region2: #{tpu_custom_call.1} parent=1 // loop_pre_header
      _
    $region3: #{tpu_custom_call.1} parent=1 // loop_header
      %s20 = sphi 0, %s24
      %p21 = scmp.ge.s32.totalorder %s20, 6
      %s30 = sphi 0, %s32
      %s33 = sphi 0, %s30
      %s34 = sphi 0, %s33
      %s50 = sphi 0, %s34
      %s54 = sphi 0, %s54
      %s56 = sphi 0, %s54
      %s57 = sphi 0, %s56
      %s71 = sphi 0, %s57
      %s75 = sphi 0, %s75
      %s77 = sphi 0, %s75
      %s78 = sphi 0, %s77
      %s92 = sphi 0, %s78
      %s96 = sphi 0, %s96
      %s98 = sphi 0, %s96
      %s99 = sphi 0, %s98
      %s113 = sphi 0, %s99
      %s117 = sphi 0, %s117
      %s119 = sphi 0, %s117
      %s120 = sphi 0, %s119
      %s134 = sphi 0, %s120
      %s138 = sphi 0, %s138
      %s140 = sphi 0, %s138
      %s141 = sphi 0, %s140
      %s155 = sphi 0, %s141
      %s159 = sphi 0, %s159
      %s161 = sphi 0, %s159
      %s162 = sphi 0, %s161
      %s176 = sphi 0, %s162
      %s182 = sphi 0, %s184
      %s185 = sphi 0, %s182
      %s186 = sphi 0, %s185
      %s202 = sphi 0, %s186
    $region4: #{tpu_custom_call.1} parent=1 // loop_header_branch
      %23 = sbr.rel (%p21) target = $region8
    $region5: #{tpu_custom_call.1} parent=1 // loop_body
      %s25 = ssub.s32 %s20, 1
      %s26 = ssub.s32 %s20, 2
      %s27 = sadd.s32 %s20, 1
      %s28 = ssub.s32 %s20, %s27
      %p29 = scmp.eq.s32.totalorder %s28, 0
      %s31 = sadd.s32 %s30, 1
      %s32 = scalar_select %p29, %s30, %s31
      %p35 = pneg %p29
      %p36 = scmp.eq.s32.totalorder %s20, 3
      %p37 = por %p35, %p36
      %p38 = scmp.ne.s32.totalorder %s30, %s33
      %p39 = scmp.eq.s32.totalorder %s20, 0
      %p40 = por %p38, %p39
      %p41 = scmp.ne.s32.totalorder %s30, %s33
      %p42 = scmp.eq.s32.totalorder %s25, 3
      %p43 = por %p41, %p42
      %p44 = scmp.ne.s32.totalorder %s33, %s34
      %p45 = scmp.eq.s32.totalorder %s25, 0
      %p46 = por %p44, %p45
      %p47 = scmp.ne.s32.totalorder %s33, %s34
      %p48 = scmp.eq.s32.totalorder %s26, 3
      %p49 = por %p47, %p48
      %p51 = scmp.ne.s32.totalorder %s34, %s50
      %p52 = scmp.eq.s32.totalorder %s26, 0
      %p53 = por %p51, %p52
      %s55 = sadd.s32 %s54, 1
      %p58 = scmp.eq.s32.totalorder %s20, 3
      %p59 = scmp.ne.s32.totalorder %s54, %s56
      %p60 = scmp.eq.s32.totalorder %s20, 0
      %p61 = por %p59, %p60
      %p62 = scmp.ne.s32.totalorder %s54, %s56
      %p63 = scmp.eq.s32.totalorder %s25, 3
      %p64 = por %p62, %p63
      %p65 = scmp.ne.s32.totalorder %s56, %s57
      %p66 = scmp.eq.s32.totalorder %s25, 0
      %p67 = por %p65, %p66
      %p68 = scmp.ne.s32.totalorder %s56, %s57
      %p69 = scmp.eq.s32.totalorder %s26, 3
      %p70 = por %p68, %p69
      %p72 = scmp.ne.s32.totalorder %s57, %s71
      %p73 = scmp.eq.s32.totalorder %s26, 0
      %p74 = por %p72, %p73
      %s76 = sadd.s32 %s75, 1
      %p79 = scmp.eq.s32.totalorder %s20, 3
      %p80 = scmp.ne.s32.totalorder %s75, %s77
      %p81 = scmp.eq.s32.totalorder %s20, 0
      %p82 = por %p80, %p81
      %p83 = scmp.ne.s32.totalorder %s75, %s77
      %p84 = scmp.eq.s32.totalorder %s25, 3
      %p85 = por %p83, %p84
      %p86 = scmp.ne.s32.totalorder %s77, %s78
      %p87 = scmp.eq.s32.totalorder %s25, 0
      %p88 = por %p86, %p87
      %p89 = scmp.ne.s32.totalorder %s77, %s78
      %p90 = scmp.eq.s32.totalorder %s26, 3
      %p91 = por %p89, %p90
      %p93 = scmp.ne.s32.totalorder %s78, %s92
      %p94 = scmp.eq.s32.totalorder %s26, 0
      %p95 = por %p93, %p94
      %s97 = sadd.s32 %s96, 1
      %p100 = scmp.eq.s32.totalorder %s20, 3
      %p101 = scmp.ne.s32.totalorder %s96, %s98
      %p102 = scmp.eq.s32.totalorder %s20, 0
      %p103 = por %p101, %p102
      %p104 = scmp.ne.s32.totalorder %s96, %s98
      %p105 = scmp.eq.s32.totalorder %s25, 3
      %p106 = por %p104, %p105
      %p107 = scmp.ne.s32.totalorder %s98, %s99
      %p108 = scmp.eq.s32.totalorder %s25, 0
      %p109 = por %p107, %p108
      %p110 = scmp.ne.s32.totalorder %s98, %s99
      %p111 = scmp.eq.s32.totalorder %s26, 3
      %p112 = por %p110, %p111
      %p114 = scmp.ne.s32.totalorder %s99, %s113
      %p115 = scmp.eq.s32.totalorder %s26, 0
      %p116 = por %p114, %p115
      %s118 = sadd.s32 %s117, 1
      %p121 = scmp.eq.s32.totalorder %s20, 3
      %p122 = scmp.ne.s32.totalorder %s117, %s119
      %p123 = scmp.eq.s32.totalorder %s20, 0
      %p124 = por %p122, %p123
      %p125 = scmp.ne.s32.totalorder %s117, %s119
      %p126 = scmp.eq.s32.totalorder %s25, 3
      %p127 = por %p125, %p126
      %p128 = scmp.ne.s32.totalorder %s119, %s120
      %p129 = scmp.eq.s32.totalorder %s25, 0
      %p130 = por %p128, %p129
      %p131 = scmp.ne.s32.totalorder %s119, %s120
      %p132 = scmp.eq.s32.totalorder %s26, 3
      %p133 = por %p131, %p132
      %p135 = scmp.ne.s32.totalorder %s120, %s134
      %p136 = scmp.eq.s32.totalorder %s26, 0
      %p137 = por %p135, %p136
      %s139 = sadd.s32 %s138, 1
      %p142 = scmp.eq.s32.totalorder %s20, 3
      %p143 = scmp.ne.s32.totalorder %s138, %s140
      %p144 = scmp.eq.s32.totalorder %s20, 0
      %p145 = por %p143, %p144
      %p146 = scmp.ne.s32.totalorder %s138, %s140
      %p147 = scmp.eq.s32.totalorder %s25, 3
      %p148 = por %p146, %p147
      %p149 = scmp.ne.s32.totalorder %s140, %s141
      %p150 = scmp.eq.s32.totalorder %s25, 0
      %p151 = por %p149, %p150
      %p152 = scmp.ne.s32.totalorder %s140, %s141
      %p153 = scmp.eq.s32.totalorder %s26, 3
      %p154 = por %p152, %p153
      %p156 = scmp.ne.s32.totalorder %s141, %s155
      %p157 = scmp.eq.s32.totalorder %s26, 0
      %p158 = por %p156, %p157
      %s160 = sadd.s32 %s159, 1
      %p163 = scmp.eq.s32.totalorder %s20, 3
      %p164 = scmp.ne.s32.totalorder %s159, %s161
      %p165 = scmp.eq.s32.totalorder %s20, 0
      %p166 = por %p164, %p165
      %p167 = scmp.ne.s32.totalorder %s159, %s161
      %p168 = scmp.eq.s32.totalorder %s25, 3
      %p169 = por %p167, %p168
      %p170 = scmp.ne.s32.totalorder %s161, %s162
      %p171 = scmp.eq.s32.totalorder %s25, 0
      %p172 = por %p170, %p171
      %p173 = scmp.ne.s32.totalorder %s161, %s162
      %p174 = scmp.eq.s32.totalorder %s26, 3
      %p175 = por %p173, %p174
      %p177 = scmp.ne.s32.totalorder %s162, %s176
      %p178 = scmp.eq.s32.totalorder %s26, 0
      %p179 = por %p177, %p178
      %s180 = ssub.s32 %s20, %s27
      %p181 = scmp.eq.s32.totalorder %s180, 0
      %s183 = sadd.s32 %s182, 1
      %s184 = scalar_select %p181, %s182, %s183
      %p187 = pneg %p181
      %p188 = scmp.eq.s32.totalorder %s20, 3
      %p189 = por %p187, %p188
      %p190 = scmp.ne.s32.totalorder %s182, %s185
      %p191 = scmp.eq.s32.totalorder %s20, 0
      %p192 = por %p190, %p191
      %p193 = scmp.ne.s32.totalorder %s182, %s185
      %p194 = scmp.eq.s32.totalorder %s25, 3
      %p195 = por %p193, %p194
      %p196 = scmp.ne.s32.totalorder %s185, %s186
      %p197 = scmp.eq.s32.totalorder %s25, 0
      %p198 = por %p196, %p197
      %p199 = scmp.ne.s32.totalorder %s185, %s186
      %p200 = scmp.eq.s32.totalorder %s26, 3
      %p201 = por %p199, %p200
      %p203 = scmp.ne.s32.totalorder %s186, %s202
      %p204 = scmp.eq.s32.totalorder %s26, 0
      %p205 = por %p203, %p204
      %p206 = scmp.le.s32.totalorder 1, %s20
      %p207 = scmp.lt.s32.totalorder %s20, 5
      %p208 = pnand %p206, %p207
      %p209 = pneg %p208
      // Predicated region
      $region9: #{tpu_custom_call.1} parent=5 // pred_check
        _
      $region10: #{tpu_custom_call.1} parent=5 // pred_check_branch
        %211 = sbr.rel (%p208) target = $region12
      $region11: #{tpu_custom_call.1} parent=5 // pred_region
        %s212 = ssub.s32 %s20, 1
        // Predicated region
        $region13: #{tpu_custom_call.1} parent=11 // pred_check
          %p213 = pneg %p67
        $region14: #{tpu_custom_call.1} parent=11 // pred_check_branch
          %215 = sbr.rel (%p213) target = $region16
        $region15: #{tpu_custom_call.1} parent=11 // pred_region
          _
        $region16: #{tpu_custom_call.1} parent=11 // pred_fallthru
          _
        // Predicated region
        $region17: #{tpu_custom_call.1} parent=11 // pred_check
          %p216 = pneg %p88
        $region18: #{tpu_custom_call.1} parent=11 // pred_check_branch
          %218 = sbr.rel (%p216) target = $region20
        $region19: #{tpu_custom_call.1} parent=11 // pred_region
          _
        $region20: #{tpu_custom_call.1} parent=11 // pred_fallthru
          _
        // Predicated region
        $region21: #{tpu_custom_call.1} parent=11 // pred_check
          %p219 = pneg %p109
        $region22: #{tpu_custom_call.1} parent=11 // pred_check_branch
          %221 = sbr.rel (%p219) target = $region24
        $region23: #{tpu_custom_call.1} parent=11 // pred_region
          %s223 = ssub.s32 2048, 2048
          %224 = vsyncadd [#allocation6], %s223
          %s225 = sshll.u32 [#allocation5], 4
          %s226 = int_to_ptr.vmem [resolvable:$true] %s225
          %231 = dma.hbm_to_vmem [thread:$0]  %s3, 2048, %s226, [#allocation6], 128, 128, 8
        $region24: #{tpu_custom_call.1} parent=11 // pred_fallthru
          _
        // Predicated region
        $region25: #{tpu_custom_call.1} parent=11 // pred_check
          %p232 = pneg %p130
        $region26: #{tpu_custom_call.1} parent=11 // pred_check_branch
          %234 = sbr.rel (%p232) target = $region28
        $region27: #{tpu_custom_call.1} parent=11 // pred_region
          _
        $region28: #{tpu_custom_call.1} parent=11 // pred_fallthru
          _
        // Predicated region
        $region29: #{tpu_custom_call.1} parent=11 // pred_check
          %p235 = pneg %p151
        $region30: #{tpu_custom_call.1} parent=11 // pred_check_branch
          %237 = sbr.rel (%p235) target = $region32
        $region31: #{tpu_custom_call.1} parent=11 // pred_region
          %s239 = ssub.s32 2048, 2048
          %240 = vsyncadd [#allocation6], %s239
          %s241 = sshll.u32 [#allocation7], 4
          %s242 = int_to_ptr.vmem [resolvable:$true] %s241
          %247 = dma.hbm_to_vmem [thread:$0]  %s5, 2048, %s242, [#allocation6], 64, 64, 4
        $region32: #{tpu_custom_call.1} parent=11 // pred_fallthru
          _
        // Predicated region
        $region33: #{tpu_custom_call.1} parent=11 // pred_check
          %p248 = pneg %p172
        $region34: #{tpu_custom_call.1} parent=11 // pred_check_branch
          %250 = sbr.rel (%p248) target = $region36
        $region35: #{tpu_custom_call.1} parent=11 // pred_region
          _
        $region36: #{tpu_custom_call.1} parent=11 // pred_fallthru
          _
      $region12: #{tpu_custom_call.1} parent=5 // pred_fallthru
        _
      %p251 = scmp.lt.s32.totalorder %s20, 4
      // Predicated region
      $region37: #{tpu_custom_call.1} parent=5 // pred_check
        %p252 = pneg %p251
      $region38: #{tpu_custom_call.1} parent=5 // pred_check_branch
        %254 = sbr.rel (%p252) target = $region40
      $region39: #{tpu_custom_call.1} parent=5 // pred_region
        // Predicated region
        $region41: #{tpu_custom_call.1} parent=39 // pred_check
          %p255 = pneg %p40
        $region42: #{tpu_custom_call.1} parent=39 // pred_check_branch
          %257 = sbr.rel (%p255) target = $region44
        $region43: #{tpu_custom_call.1} parent=39 // pred_region
          %s258 = sand.u32 %s30, 1
          %s259 = scalar_lea.sflag [#allocation3], %s258
          %s260 = sand.u32 %s30, 1
          %s261 = smul.addr %s260, 64
          %s262 = scalar_lea.vmem [#allocation2], %s261
          %s263 = smul.u32 8, %s20
          %s265 = ssub.s32 1024, 1024
          %266 = vsyncadd %s259, %s265
          %s267 = smul.addr %s263, 128
          %s268 = scalar_lea.hbm %s0, %s267
          %s269 = sshll.u32 %s262, 4
          %s270 = int_to_ptr.vmem [resolvable:$true] %s269
          %275 = dma.hbm_to_vmem [thread:$0]  %s268, 1024, %s270, %s259, 128, 128, 8
        $region44: #{tpu_custom_call.1} parent=39 // pred_fallthru
          _
      $region40: #{tpu_custom_call.1} parent=5 // pred_fallthru
        _
      %p276 = scmp.le.s32.totalorder 1, %s20
      %p277 = scmp.lt.s32.totalorder %s20, 5
      %p278 = pnand %p276, %p277
      %p279 = pneg %p278
      // Predicated region
      $region45: #{tpu_custom_call.1} parent=5 // pred_check
        _
      $region46: #{tpu_custom_call.1} parent=5 // pred_check_branch
        %281 = sbr.rel (%p278) target = $region48
      $region47: #{tpu_custom_call.1} parent=5 // pred_region
        %s282 = ssub.s32 %s20, 1
        %s283 = sand.u32 %s33, 1
        %s284 = scalar_lea.sflag [#allocation3], %s283
        %s285 = sand.u32 %s33, 1
        %s286 = smul.addr %s285, 64
        %s287 = scalar_lea.vmem [#allocation2], %s286
        // Predicated region
        $region49: #{tpu_custom_call.1} parent=47 // pred_check
          %p288 = pneg %p46
        $region50: #{tpu_custom_call.1} parent=47 // pred_check_branch
          %290 = sbr.rel (%p288) target = $region52
        $region51: #{tpu_custom_call.1} parent=47 // pred_region
          %291 = dma.done %s284, 1024
        $region52: #{tpu_custom_call.1} parent=47 // pred_fallthru
          _
        // Predicated region
        $region53: #{tpu_custom_call.1} parent=47 // pred_check
          %p292 = pneg %p109
        $region54: #{tpu_custom_call.1} parent=47 // pred_check_branch
          %294 = sbr.rel (%p292) target = $region56
        $region55: #{tpu_custom_call.1} parent=47 // pred_region
          %295 = dma.done [#allocation6], 2048
        $region56: #{tpu_custom_call.1} parent=47 // pred_fallthru
          _
        // Predicated region
        $region57: #{tpu_custom_call.1} parent=47 // pred_check
          %p296 = pneg %p151
        $region58: #{tpu_custom_call.1} parent=47 // pred_check_branch
          %298 = sbr.rel (%p296) target = $region60
        $region59: #{tpu_custom_call.1} parent=47 // pred_region
          %299 = dma.done [#allocation6], 2048
        $region60: #{tpu_custom_call.1} parent=47 // pred_fallthru
          _
        %s300 = sand.u32 %s33, 1
        %s301 = scalar_lea.sflag [#allocation3], %s300
        %s302 = sand.u32 %s33, 1
        %s303 = smul.addr %s302, 64
        %s304 = scalar_lea.vmem [#allocation2], %s303
        %p305 = pneg %p46
        %p306 = pneg %p43
        %p307 = pneg %p67
        %p308 = pneg %p64
        %p309 = pneg %p88
        %p310 = pneg %p85
        %p311 = pneg %p109
        %p312 = pneg %p106
        %p313 = pneg %p130
        %p314 = pneg %p127
        %p315 = pneg %p151
        %p316 = pneg %p148
        %p317 = pneg %p172
        %p318 = pneg %p169
        %p319 = pneg %p198
        %p320 = pneg %p195
        %s321 = sand.u32 %s185, 1
        %s322 = scalar_lea.sflag [#allocation4], %s321
        %s323 = sand.u32 %s185, 1
        %s324 = smul.addr %s323, 64
        %s325 = scalar_lea.vmem [#allocation8], %s324
        %s326 = smul.u32 8, %s25
        %s327 = smul.u32 8, %s25
        %v329 = vld [vmem:[%s287] sm:$0xff]
        %v330 = vld [vmem:[%s287 + $0x8] sm:$0xff]
        %v331 = vld [vmem:[%s287 + $0x10] sm:$0xff]
        %v332 = vld [vmem:[%s287 + $0x18] sm:$0xff]
        %v333 = vld [vmem:[%s287 + $0x20] sm:$0xff]
        %v334 = vld [vmem:[%s287 + $0x28] sm:$0xff]
        %v335 = vld [vmem:[%s287 + $0x30] sm:$0xff]
        %v336 = vld [vmem:[%s287 + $0x38] sm:$0xff]
        %337 = vadd.xlane.f32.xlu0 %v329
        %v338 = vpop.xlane.xlu0 %337
        %339 = vadd.xlane.f32.xlu0 %v330
        %v340 = vpop.xlane.xlu0 %339
        %341 = vadd.xlane.f32.xlu0 %v331
        %v342 = vpop.xlane.xlu0 %341
        %343 = vadd.xlane.f32.xlu0 %v332
        %v344 = vpop.xlane.xlu0 %343
        %345 = vadd.xlane.f32.xlu0 %v333
        %v346 = vpop.xlane.xlu0 %345
        %347 = vadd.xlane.f32.xlu0 %v334
        %v348 = vpop.xlane.xlu0 %347
        %349 = vadd.xlane.f32.xlu0 %v335
        %v350 = vpop.xlane.xlu0 %349
        %351 = vadd.xlane.f32.xlu0 %v336
        %v352 = vpop.xlane.xlu0 %351
        %v353 = vrcp.pop 128.0
        %v354 = vmul.f32 %v338, %v353
        %v355 = vmul.f32 %v340, %v353
        %v356 = vmul.f32 %v342, %v353
        %v357 = vmul.f32 %v344, %v353
        %v358 = vmul.f32 %v346, %v353
        %v359 = vmul.f32 %v348, %v353
        %v360 = vmul.f32 %v350, %v353
        %v361 = vmul.f32 %v352, %v353
        %v362 = vsub.f32 %v329, %v354
        %v363 = vsub.f32 %v330, %v355
        %v364 = vsub.f32 %v331, %v356
        %v365 = vsub.f32 %v332, %v357
        %v366 = vsub.f32 %v333, %v358
        %v367 = vsub.f32 %v334, %v359
        %v368 = vsub.f32 %v335, %v360
        %v369 = vsub.f32 %v336, %v361
        %v370 = vmul.f32 %v362, %v362
        %v371 = vmul.f32 %v363, %v363
        %v372 = vmul.f32 %v364, %v364
        %v373 = vmul.f32 %v365, %v365
        %v374 = vmul.f32 %v366, %v366
        %v375 = vmul.f32 %v367, %v367
        %v376 = vmul.f32 %v368, %v368
        %v377 = vmul.f32 %v369, %v369
        %378 = vadd.xlane.f32.xlu0 %v370
        %v379 = vpop.xlane.xlu0 %378
        %380 = vadd.xlane.f32.xlu0 %v371
        %v381 = vpop.xlane.xlu0 %380
        %382 = vadd.xlane.f32.xlu0 %v372
        %v383 = vpop.xlane.xlu0 %382
        %384 = vadd.xlane.f32.xlu0 %v373
        %v385 = vpop.xlane.xlu0 %384
        %386 = vadd.xlane.f32.xlu0 %v374
        %v387 = vpop.xlane.xlu0 %386
        %388 = vadd.xlane.f32.xlu0 %v375
        %v389 = vpop.xlane.xlu0 %388
        %390 = vadd.xlane.f32.xlu0 %v376
        %v391 = vpop.xlane.xlu0 %390
        %392 = vadd.xlane.f32.xlu0 %v377
        %v393 = vpop.xlane.xlu0 %392
        %v394 = vmul.f32 %v379, %v353
        %v395 = vmul.f32 %v381, %v353
        %v396 = vmul.f32 %v383, %v353
        %v397 = vmul.f32 %v385, %v353
        %v398 = vmul.f32 %v387, %v353
        %v399 = vmul.f32 %v389, %v353
        %v400 = vmul.f32 %v391, %v353
        %v401 = vmul.f32 %v393, %v353
        %v402 = vld [vmem:[%s1] sm:$0x1]
        %v403 = vadd.f32 %v394, 1e-05
        %v404 = vadd.f32 %v395, 1e-05
        %v405 = vadd.f32 %v396, 1e-05
        %v406 = vadd.f32 %v397, 1e-05
        %v407 = vadd.f32 %v398, 1e-05
        %v408 = vadd.f32 %v399, 1e-05
        %v409 = vadd.f32 %v400, 1e-05
        %v410 = vadd.f32 %v401, 1e-05
        %v411 = vrsqrt.pop %v403
        %v412 = vrsqrt.pop %v404
        %v413 = vrsqrt.pop %v405
        %v414 = vrsqrt.pop %v406
        %v415 = vrsqrt.pop %v407
        %v416 = vrsqrt.pop %v408
        %v417 = vrsqrt.pop %v409
        %v418 = vrsqrt.pop %v410
        %v420 = vlaneseq
        %v421 = vshrl.u32 %v420, 7
        %v422 = vsub.s32 0, %v421
        %v423 = vrot.slane %v402, %v422
        %v425 = vmul.f32 %v423, %v411
        %v426 = vmul.f32 %v423, %v412
        %v427 = vmul.f32 %v423, %v413
        %v428 = vmul.f32 %v423, %v414
        %v429 = vmul.f32 %v423, %v415
        %v430 = vmul.f32 %v423, %v416
        %v431 = vmul.f32 %v423, %v417
        %v432 = vmul.f32 %v423, %v418
        %v433 = vmul.f32 %v362, %v425
        %v434 = vmul.f32 %v363, %v426
        %v435 = vmul.f32 %v364, %v427
        %v436 = vmul.f32 %v365, %v428
        %v437 = vmul.f32 %v366, %v429
        %v438 = vmul.f32 %v367, %v430
        %v439 = vmul.f32 %v368, %v431
        %v440 = vmul.f32 %v369, %v432
        %v441 = vld [vmem:[%s2] sm:$0x1]
        %v443 = vlaneseq
        %v444 = vshrl.u32 %v443, 7
        %v445 = vsub.s32 0, %v444
        %v446 = vrot.slane %v441, %v445
        %v448 = vadd.f32 %v433, %v446
        %v449 = vadd.f32 %v434, %v446
        %v450 = vadd.f32 %v435, %v446
        %v451 = vadd.f32 %v436, %v446
        %v452 = vadd.f32 %v437, %v446
        %v453 = vadd.f32 %v438, %v446
        %v454 = vadd.f32 %v439, %v446
        %v455 = vadd.f32 %v440, %v446
        %v456 = vpack.c.bf16 %v449, %v448
        %v457 = vpack.c.bf16 %v451, %v450
        %v458 = vpack.c.bf16 %v453, %v452
        %v459 = vpack.c.bf16 %v455, %v454
        %v460 = vld [vmem:[#allocation5] sm:$0xff]
        %v461 = vld [vmem:[#allocation5 + $0x8] sm:$0xff]
        %v462 = vld [vmem:[#allocation5 + $0x10] sm:$0xff]
        %v463 = vld [vmem:[#allocation5 + $0x18] sm:$0xff]
        %v464 = vld [vmem:[#allocation5 + $0x20] sm:$0xff]
        %v465 = vld [vmem:[#allocation5 + $0x28] sm:$0xff]
        %v466 = vld [vmem:[#allocation5 + $0x30] sm:$0xff]
        %v467 = vld [vmem:[#allocation5 + $0x38] sm:$0xff]
        %v468 = vld [vmem:[#allocation5 + $0x40] sm:$0xff]
        %v469 = vld [vmem:[#allocation5 + $0x48] sm:$0xff]
        %v470 = vld [vmem:[#allocation5 + $0x50] sm:$0xff]
        %v471 = vld [vmem:[#allocation5 + $0x58] sm:$0xff]
        %v472 = vld [vmem:[#allocation5 + $0x60] sm:$0xff]
        %v473 = vld [vmem:[#allocation5 + $0x68] sm:$0xff]
        %v474 = vld [vmem:[#allocation5 + $0x70] sm:$0xff]
        %v475 = vld [vmem:[#allocation5 + $0x78] sm:$0xff]
        %v476 = vld [vmem:[%s4] sm:$0x3]
        %v478 = vlaneseq
        %v479 = vshrl.u32 %v478, 7
        %v480 = vsub.s32 0, %v479
        %v481 = vrot.slane %v476, %v480
        %v482 = vlaneseq
        %v483 = vshrl.u32 %v482, 7
        %v484 = vsub.s32 1, %v483
        %v485 = vrot.slane %v476, %v484
        %v504 = vunpack.c.l.b16 %v460
        %v505 = vunpack.c.h.b16 %v460
        %v506 = vunpack.c.l.b16 %v461
        %v507 = vunpack.c.h.b16 %v461
        %v508 = vunpack.c.l.b16 %v462
        %v509 = vunpack.c.h.b16 %v462
        %v510 = vunpack.c.l.b16 %v463
        %v511 = vunpack.c.h.b16 %v463
        %v512 = vunpack.c.l.b16 %v464
        %v513 = vunpack.c.h.b16 %v464
        %v514 = vunpack.c.l.b16 %v465
        %v515 = vunpack.c.h.b16 %v465
        %v516 = vunpack.c.l.b16 %v466
        %v517 = vunpack.c.h.b16 %v466
        %v518 = vunpack.c.l.b16 %v467
        %v519 = vunpack.c.h.b16 %v467
        %v520 = vunpack.c.l.b16 %v468
        %v521 = vunpack.c.h.b16 %v468
        %v522 = vunpack.c.l.b16 %v469
        %v523 = vunpack.c.h.b16 %v469
        %v524 = vunpack.c.l.b16 %v470
        %v525 = vunpack.c.h.b16 %v470
        %v526 = vunpack.c.l.b16 %v471
        %v527 = vunpack.c.h.b16 %v471
        %v528 = vunpack.c.l.b16 %v472
        %v529 = vunpack.c.h.b16 %v472
        %v530 = vunpack.c.l.b16 %v473
        %v531 = vunpack.c.h.b16 %v473
        %v532 = vunpack.c.l.b16 %v474
        %v533 = vunpack.c.h.b16 %v474
        %v534 = vunpack.c.l.b16 %v475
        %v535 = vunpack.c.h.b16 %v475
        %v536 = vpack.c.b16 %v506, %v504
        %v537 = vpack.c.b16 %v507, %v505
        %v538 = vpack.c.b16 %v510, %v508
        %v539 = vpack.c.b16 %v511, %v509
        %v540 = vpack.c.b16 %v514, %v512
        %v541 = vpack.c.b16 %v515, %v513
        %v542 = vpack.c.b16 %v518, %v516
        %v543 = vpack.c.b16 %v519, %v517
        %v544 = vpack.c.b16 %v522, %v520
        %v545 = vpack.c.b16 %v523, %v521
        %v546 = vpack.c.b16 %v526, %v524
        %v547 = vpack.c.b16 %v527, %v525
        %v548 = vpack.c.b16 %v530, %v528
        %v549 = vpack.c.b16 %v531, %v529
        %v550 = vpack.c.b16 %v534, %v532
        %v551 = vpack.c.b16 %v535, %v533
        %568 = vmatprep.subr.bf16.mxu0 %v537
        %569 = vmatpush1.bf16.msra.mxu0 %v536
        %570 = vmatprep.subr.bf16.mxu0 %v539
        %571 = vmatpush1.bf16.msra.mxu0 %v538
        %572 = vmatprep.subr.bf16.mxu0 %v541
        %573 = vmatpush1.bf16.msra.mxu0 %v540
        %574 = vmatprep.subr.bf16.mxu0 %v543
        %575 = vmatpush1.bf16.msra.mxu0 %v542
        %576 = vmatprep.subr.bf16.mxu0 %v545
        %577 = vmatpush1.bf16.msra.mxu0 %v544
        %578 = vmatprep.subr.bf16.mxu0 %v547
        %579 = vmatpush1.bf16.msra.mxu0 %v546
        %580 = vmatprep.subr.bf16.mxu0 %v549
        %581 = vmatpush1.bf16.msra.mxu0 %v548
        %582 = vmatprep.subr.bf16.mxu0 %v551
        %583 = vmatpush1.bf16.msra.mxu0 %v550
        %584 = vmatprep.subr.bf16.mxu0 0
        %585 = vmatpush1.bf16.msra.mxu0 0
        %586 = vmatprep.subr.bf16.mxu0 0
        %587 = vmatpush1.bf16.msra.mxu0 0
        %588 = vmatprep.subr.bf16.mxu0 0
        %589 = vmatpush1.bf16.msra.mxu0 0
        %590 = vmatprep.subr.bf16.mxu0 0
        %591 = vmatpush1.bf16.msra.mxu0 0
        %592 = vmatprep.subr.bf16.mxu0 0
        %593 = vmatpush1.bf16.msra.mxu0 0
        %594 = vmatprep.subr.bf16.mxu0 0
        %595 = vmatpush1.bf16.msra.mxu0 0
        %596 = vmatprep.subr.bf16.mxu0 0
        %597 = vmatpush1.bf16.msra.mxu0 0
        %598 = vmatprep.subr.bf16.mxu0 0
        %599 = vmatpush1.bf16.msra.mxu0 0
        %600 = vmatprep.mubr.bf16.mxu0 0
        %601 = vmatmul.mubr.bf16.gmra.mrb[0].mxu0 %v456
        %v602 = vpop.f32.mrb[0].mxu0
        %v603 = vadd.f32 %v481, %v602
        %v604 = vpop.f32.mrb[0].mxu0
        %v605 = vadd.f32 %v485, %v604
        %v606 = vpop.f32.mrb[0].mxu0
        %v607 = vadd.f32 %v481, %v606
        %v608 = vpop.f32.mrb[0].mxu0
        %v609 = vadd.f32 %v485, %v608
        %610 = vmatprep.mubr.bf16.mxu0 0
        %611 = vmatmul.mubr.bf16.gmra.mrb[0].mxu0 %v457
        %v612 = vpop.f32.mrb[0].mxu0
        %v613 = vadd.f32 %v481, %v612
        %v614 = vpop.f32.mrb[0].mxu0
        %v615 = vadd.f32 %v485, %v614
        %v616 = vpop.f32.mrb[0].mxu0
        %v617 = vadd.f32 %v481, %v616
        %v618 = vpop.f32.mrb[0].mxu0
        %v619 = vadd.f32 %v485, %v618
        %620 = vmatprep.mubr.bf16.mxu0 0
        %621 = vmatmul.mubr.bf16.gmra.mrb[0].mxu0 %v458
        %v622 = vpop.f32.mrb[0].mxu0
        %v623 = vadd.f32 %v481, %v622
        %v624 = vpop.f32.mrb[0].mxu0
        %v625 = vadd.f32 %v485, %v624
        %v626 = vpop.f32.mrb[0].mxu0
        %v627 = vadd.f32 %v481, %v626
        %v628 = vpop.f32.mrb[0].mxu0
        %v629 = vadd.f32 %v485, %v628
        %630 = vmatprep.mubr.bf16.mxu0 0
        %631 = vmatmul.mubr.bf16.gmra.mrb[0].mxu0 %v459
        %v632 = vpop.f32.mrb[0].mxu0
        %v633 = vadd.f32 %v481, %v632
        %v634 = vpop.f32.mrb[0].mxu0
        %v635 = vadd.f32 %v485, %v634
        %v636 = vpop.f32.mrb[0].mxu0
        %v637 = vadd.f32 %v481, %v636
        %v638 = vpop.f32.mrb[0].mxu0
        %v639 = vadd.f32 %v485, %v638
        %640 = vdwg.mxu0
        %v641 = vmax.f32 %v603, 0.0
        %v642 = vmax.f32 %v605, 0.0
        %v643 = vmax.f32 %v607, 0.0
        %v644 = vmax.f32 %v609, 0.0
        %v645 = vmax.f32 %v613, 0.0
        %v646 = vmax.f32 %v615, 0.0
        %v647 = vmax.f32 %v617, 0.0
        %v648 = vmax.f32 %v619, 0.0
        %v649 = vmax.f32 %v623, 0.0
        %v650 = vmax.f32 %v625, 0.0
        %v651 = vmax.f32 %v627, 0.0
        %v652 = vmax.f32 %v629, 0.0
        %v653 = vmax.f32 %v633, 0.0
        %v654 = vmax.f32 %v635, 0.0
        %v655 = vmax.f32 %v637, 0.0
        %v656 = vmax.f32 %v639, 0.0
        %v657 = vpack.c.bf16 %v643, %v641
        %v658 = vpack.c.bf16 %v644, %v642
        %v659 = vpack.c.bf16 %v647, %v645
        %v660 = vpack.c.bf16 %v648, %v646
        %v661 = vpack.c.bf16 %v651, %v649
        %v662 = vpack.c.bf16 %v652, %v650
        %v663 = vpack.c.bf16 %v655, %v653
        %v664 = vpack.c.bf16 %v656, %v654
        %v665 = vld [vmem:[#allocation7] sm:$0xf]
        %v666 = vld [vmem:[#allocation7 + $0x4] sm:$0xf]
        %v667 = vld [vmem:[#allocation7 + $0x8] sm:$0xf]
        %v668 = vld [vmem:[#allocation7 + $0xc] sm:$0xf]
        %v669 = vld [vmem:[#allocation7 + $0x10] sm:$0xf]
        %v670 = vld [vmem:[#allocation7 + $0x14] sm:$0xf]
        %v671 = vld [vmem:[#allocation7 + $0x18] sm:$0xf]
        %v672 = vld [vmem:[#allocation7 + $0x1c] sm:$0xf]
        %v673 = vld [vmem:[#allocation7 + $0x20] sm:$0xf]
        %v674 = vld [vmem:[#allocation7 + $0x24] sm:$0xf]
        %v675 = vld [vmem:[#allocation7 + $0x28] sm:$0xf]
        %v676 = vld [vmem:[#allocation7 + $0x2c] sm:$0xf]
        %v677 = vld [vmem:[#allocation7 + $0x30] sm:$0xf]
        %v678 = vld [vmem:[#allocation7 + $0x34] sm:$0xf]
        %v679 = vld [vmem:[#allocation7 + $0x38] sm:$0xf]
        %v680 = vld [vmem:[#allocation7 + $0x3c] sm:$0xf]
        %v681 = vld [vmem:[#allocation7 + $0x40] sm:$0xf]
        %v682 = vld [vmem:[#allocation7 + $0x44] sm:$0xf]
        %v683 = vld [vmem:[#allocation7 + $0x48] sm:$0xf]
        %v684 = vld [vmem:[#allocation7 + $0x4c] sm:$0xf]
        %v685 = vld [vmem:[#allocation7 + $0x50] sm:$0xf]
        %v686 = vld [vmem:[#allocation7 + $0x54] sm:$0xf]
        %v687 = vld [vmem:[#allocation7 + $0x58] sm:$0xf]
        %v688 = vld [vmem:[#allocation7 + $0x5c] sm:$0xf]
        %v689 = vld [vmem:[#allocation7 + $0x60] sm:$0xf]
        %v690 = vld [vmem:[#allocation7 + $0x64] sm:$0xf]
        %v691 = vld [vmem:[#allocation7 + $0x68] sm:$0xf]
        %v692 = vld [vmem:[#allocation7 + $0x6c] sm:$0xf]
        %v693 = vld [vmem:[#allocation7 + $0x70] sm:$0xf]
        %v694 = vld [vmem:[#allocation7 + $0x74] sm:$0xf]
        %v695 = vld [vmem:[#allocation7 + $0x78] sm:$0xf]
        %v696 = vld [vmem:[#allocation7 + $0x7c] sm:$0xf]
        %v697 = vld [vmem:[%s6] sm:$0x1]
        %v699 = vlaneseq
        %v700 = vshrl.u32 %v699, 7
        %v701 = vsub.s32 0, %v700
        %v702 = vrot.slane %v697, %v701
        %v736 = vunpack.c.l.b16 %v665
        %v737 = vunpack.c.l.b16 %v666
        %v738 = vunpack.c.l.b16 %v667
        %v739 = vunpack.c.l.b16 %v668
        %v740 = vunpack.c.l.b16 %v669
        %v741 = vunpack.c.l.b16 %v670
        %v742 = vunpack.c.l.b16 %v671
        %v743 = vunpack.c.l.b16 %v672
        %v744 = vunpack.c.l.b16 %v673
        %v745 = vunpack.c.l.b16 %v674
        %v746 = vunpack.c.l.b16 %v675
        %v747 = vunpack.c.l.b16 %v676
        %v748 = vunpack.c.l.b16 %v677
        %v749 = vunpack.c.l.b16 %v678
        %v750 = vunpack.c.l.b16 %v679
        %v751 = vunpack.c.l.b16 %v680
        %v752 = vunpack.c.l.b16 %v681
        %v753 = vunpack.c.l.b16 %v682
        %v754 = vunpack.c.l.b16 %v683
        %v755 = vunpack.c.l.b16 %v684
        %v756 = vunpack.c.l.b16 %v685
        %v757 = vunpack.c.l.b16 %v686
        %v758 = vunpack.c.l.b16 %v687
        %v759 = vunpack.c.l.b16 %v688
        %v760 = vunpack.c.l.b16 %v689
        %v761 = vunpack.c.l.b16 %v690
        %v762 = vunpack.c.l.b16 %v691
        %v763 = vunpack.c.l.b16 %v692
        %v764 = vunpack.c.l.b16 %v693
        %v765 = vunpack.c.l.b16 %v694
        %v766 = vunpack.c.l.b16 %v695
        %v767 = vunpack.c.l.b16 %v696
        %v768 = vpack.c.b16 %v737, %v736
        %v769 = vpack.c.b16 %v739, %v738
        %v770 = vpack.c.b16 %v741, %v740
        %v771 = vpack.c.b16 %v743, %v742
        %v772 = vpack.c.b16 %v745, %v744
        %v773 = vpack.c.b16 %v747, %v746
        %v774 = vpack.c.b16 %v749, %v748
        %v775 = vpack.c.b16 %v751, %v750
        %v776 = vpack.c.b16 %v753, %v752
        %v777 = vpack.c.b16 %v755, %v754
        %v778 = vpack.c.b16 %v757, %v756
        %v779 = vpack.c.b16 %v759, %v758
        %v780 = vpack.c.b16 %v761, %v760
        %v781 = vpack.c.b16 %v763, %v762
        %v782 = vpack.c.b16 %v765, %v764
        %v783 = vpack.c.b16 %v767, %v766
        %800 = vmatprep.subr.bf16.mxu0 0
        %801 = vmatpush1.bf16.msra.mxu0 %v768
        %802 = vmatprep.subr.bf16.mxu0 0
        %803 = vmatpush1.bf16.msra.mxu0 %v769
        %804 = vmatprep.subr.bf16.mxu0 0
        %805 = vmatpush1.bf16.msra.mxu0 %v770
        %806 = vmatprep.subr.bf16.mxu0 0
        %807 = vmatpush1.bf16.msra.mxu0 %v771
        %808 = vmatprep.subr.bf16.mxu0 0
        %809 = vmatpush1.bf16.msra.mxu0 %v772
        %810 = vmatprep.subr.bf16.mxu0 0
        %811 = vmatpush1.bf16.msra.mxu0 %v773
        %812 = vmatprep.subr.bf16.mxu0 0
        %813 = vmatpush1.bf16.msra.mxu0 %v774
        %814 = vmatprep.subr.bf16.mxu0 0
        %815 = vmatpush1.bf16.msra.mxu0 %v775
        %816 = vmatprep.subr.bf16.mxu0 0
        %817 = vmatpush1.bf16.msra.mxu0 %v776
        %818 = vmatprep.subr.bf16.mxu0 0
        %819 = vmatpush1.bf16.msra.mxu0 %v777
        %820 = vmatprep.subr.bf16.mxu0 0
        %821 = vmatpush1.bf16.msra.mxu0 %v778
        %822 = vmatprep.subr.bf16.mxu0 0
        %823 = vmatpush1.bf16.msra.mxu0 %v779
        %824 = vmatprep.subr.bf16.mxu0 0
        %825 = vmatpush1.bf16.msra.mxu0 %v780
        %826 = vmatprep.subr.bf16.mxu0 0
        %827 = vmatpush1.bf16.msra.mxu0 %v781
        %828 = vmatprep.subr.bf16.mxu0 0
        %829 = vmatpush1.bf16.msra.mxu0 %v782
        %830 = vmatprep.subr.bf16.mxu0 0
        %831 = vmatpush1.bf16.msra.mxu0 %v783
        %832 = vmatprep.mubr.bf16.mxu0 %v658
        %833 = vmatmul.mubr.bf16.gmra.mrb[0].mxu0 %v657
        %v834 = vpop.f32.mrb[0].mxu0
        %v835 = vadd.f32 %v702, %v834
        %v836 = vpop.f32.mrb[0].mxu0
        %v837 = vpop.f32.mrb[0].mxu0
        %v838 = vadd.f32 %v702, %v837
        %v839 = vpop.f32.mrb[0].mxu0
        %840 = vmatprep.mubr.bf16.mxu0 %v660
        %841 = vmatmul.mubr.bf16.gmra.mrb[0].mxu0 %v659
        %v842 = vpop.f32.mrb[0].mxu0
        %v843 = vadd.f32 %v702, %v842
        %v844 = vpop.f32.mrb[0].mxu0
        %v845 = vpop.f32.mrb[0].mxu0
        %v846 = vadd.f32 %v702, %v845
        %v847 = vpop.f32.mrb[0].mxu0
        %848 = vmatprep.mubr.bf16.mxu0 %v662
        %849 = vmatmul.mubr.bf16.gmra.mrb[0].mxu0 %v661
        %v850 = vpop.f32.mrb[0].mxu0
        %v851 = vadd.f32 %v702, %v850
        %v852 = vpop.f32.mrb[0].mxu0
        %v853 = vpop.f32.mrb[0].mxu0
        %v854 = vadd.f32 %v702, %v853
        %v855 = vpop.f32.mrb[0].mxu0
        %856 = vmatprep.mubr.bf16.mxu0 %v664
        %857 = vmatmul.mubr.bf16.gmra.mrb[0].mxu0 %v663
        %v858 = vpop.f32.mrb[0].mxu0
        %v859 = vadd.f32 %v702, %v858
        %v860 = vpop.f32.mrb[0].mxu0
        %v861 = vpop.f32.mrb[0].mxu0
        %v862 = vadd.f32 %v702, %v861
        %v863 = vpop.f32.mrb[0].mxu0
        %864 = vdwg.mxu0
        %v865 = vadd.f32 %v329, %v835
        %v866 = vadd.f32 %v330, %v838
        %v867 = vadd.f32 %v331, %v843
        %v868 = vadd.f32 %v332, %v846
        %v869 = vadd.f32 %v333, %v851
        %v870 = vadd.f32 %v334, %v854
        %v871 = vadd.f32 %v335, %v859
        %v872 = vadd.f32 %v336, %v862
        %873 = vst [vmem:[%s325] sm:$0xff] %v865
        %874 = vst [vmem:[%s325 + $0x8] sm:$0xff] %v866
        %875 = vst [vmem:[%s325 + $0x10] sm:$0xff] %v867
        %876 = vst [vmem:[%s325 + $0x18] sm:$0xff] %v868
        %877 = vst [vmem:[%s325 + $0x20] sm:$0xff] %v869
        %878 = vst [vmem:[%s325 + $0x28] sm:$0xff] %v870
        %879 = vst [vmem:[%s325 + $0x30] sm:$0xff] %v871
        %880 = vst [vmem:[%s325 + $0x38] sm:$0xff] %v872
        %s881 = sand.u32 %s185, 1
        %s882 = scalar_lea.sflag [#allocation4], %s881
        %s883 = sand.u32 %s185, 1
        %s884 = smul.addr %s883, 64
        %s885 = scalar_lea.vmem [#allocation8], %s884
        // Predicated region
        $region61: #{tpu_custom_call.1} parent=47 // pred_check
          %p886 = pneg %p195
        $region62: #{tpu_custom_call.1} parent=47 // pred_check_branch
          %888 = sbr.rel (%p886) target = $region64
        $region63: #{tpu_custom_call.1} parent=47 // pred_region
          %s889 = smul.u32 8, %s25
          %s891 = ssub.s32 1024, 1024
          %892 = vsyncadd %s882, %s891
          %s893 = smul.addr %s889, 128
          %s894 = scalar_lea.hbm %s7, %s893
          %s895 = sshll.u32 %s885, 4
          %s896 = int_to_ptr.vmem [resolvable:$true] %s895
          %901 = dma.vmem_to_hbm [thread:$0]  %s896, 1024, %s894, %s882, 128, 128, 8
        $region64: #{tpu_custom_call.1} parent=47 // pred_fallthru
          _
      $region48: #{tpu_custom_call.1} parent=5 // pred_fallthru
        _
      %p902 = scmp.le.s32.totalorder 2, %s20
      // Predicated region
      $region65: #{tpu_custom_call.1} parent=5 // pred_check
        %p903 = pneg %p902
      $region66: #{tpu_custom_call.1} parent=5 // pred_check_branch
        %905 = sbr.rel (%p903) target = $region68
      $region67: #{tpu_custom_call.1} parent=5 // pred_region
        %s906 = ssub.s32 %s20, 2
        // Predicated region
        $region69: #{tpu_custom_call.1} parent=67 // pred_check
          %p907 = pneg %p201
        $region70: #{tpu_custom_call.1} parent=67 // pred_check_branch
          %909 = sbr.rel (%p907) target = $region72
        $region71: #{tpu_custom_call.1} parent=67 // pred_region
          %s910 = sand.u32 %s186, 1
          %s911 = scalar_lea.sflag [#allocation4], %s910
          %s912 = sand.u32 %s186, 1
          %s913 = smul.addr %s912, 64
          %s914 = scalar_lea.vmem [#allocation8], %s913
          %915 = dma.done %s911, 1024
        $region72: #{tpu_custom_call.1} parent=67 // pred_fallthru
          _
      $region68: #{tpu_custom_call.1} parent=5 // pred_fallthru
        _
    $region6: #{tpu_custom_call.1} parent=1 // loop_footer
      %s24 = sadd.s32 1, %s20
    $region7: #{tpu_custom_call.1} parent=1 // loop_footer_branch
      %19 = sbr.rel target = $region3
    $region8: #{tpu_custom_call.1} parent=1 // loop_exit
      _
    %916 = vsyncpa [#allocation3], 1
    %s917 = scalar_lea.sflag [#allocation3], 1
    %918 = vsyncpa %s917, 1
    %919 = vsyncpa [#allocation6], 1
    %920 = vsyncpa [#allocation4], 1
    %s921 = scalar_lea.sflag [#allocation4], 1
    %922 = vsyncpa %s921, 1

// kernel: tpu_custom_call.1
$region0: #{tpu_custom_call.1}
  #allocation0 [shape = 'u32[]', space=smem, size = 0x4, offset = 0x4, fixed_abs, tag = 'smem constant byte address 0x4 - core index']
  #allocation1 [shape = 'u32[144,128]{1,0:T(1,128)}', space=vmem, size = 0x12000, scoped, tag = 'internal scratch']
  %s0 = inlined_call_operand.hbm [shape: f32[256,128], index: 0, kind: input, shape index: {}]
  %s1 = inlined_call_operand.vmem [shape: f32[1,128], index: 1, kind: input, shape index: {}]
  %s2 = inlined_call_operand.vmem [shape: f32[1,128], index: 2, kind: input, shape index: {}]
  %s3 = inlined_call_operand.hbm [shape: bf16[128,256], index: 3, kind: input, shape index: {}]
  %s4 = inlined_call_operand.vmem [shape: f32[1,256], index: 4, kind: input, shape index: {}]
  %s5 = inlined_call_operand.hbm [shape: bf16[256,128], index: 5, kind: input, shape index: {}]
  %s6 = inlined_call_operand.vmem [shape: f32[1,128], index: 6, kind: input, shape index: {}]
  %s7 = inlined_call_operand.hbm [shape: f32[256,128], index: 7, kind: output, shape index: {}]
  %s8 = sld [smem:[#allocation0]]
  $region73: #{tpu_custom_call.1} parent=0
    _
  %s10 = ssub.s32 1, %s8
  %s11 = scalar_select 0, %s10, %s8
  $region1: #{tpu_custom_call.1} parent=0
    #allocation2 [shape = 'u8[65536]{0}', space=vmem, size = 0x10000, scoped, tag = 'input window, operand 0']
    #allocation3 [shape = 's32[2]{0}', space=sflag, size = 0x8, scoped, tag = 'scoped memory for tpu_custom_call.1']
    #allocation4 [shape = 's32[2]{0}', space=sflag, size = 0x8, scoped, tag = 'scoped memory for tpu_custom_call.1']
    #allocation5 [shape = 'u8[65536]{0}', space=vmem, size = 0x10000, scoped, tag = 'input window, operand 3, single buffered']
    #allocation6 [shape = 's32[1]{0}', space=sflag, size = 0x4, scoped, tag = 'scoped memory for tpu_custom_call.1']
    #allocation7 [shape = 'u8[65536]{0}', space=vmem, size = 0x10000, scoped, tag = 'input window, operand 5, single buffered']
    #allocation8 [shape = 'u8[65536]{0}', space=vmem, size = 0x10000, scoped, tag = 'output window, operand 0']
    %12 = vsyncpa [#allocation3], 0
    %s13 = scalar_lea.sflag [#allocation3], 1
    %14 = vsyncpa %s13, 0
    %15 = vsyncpa [#allocation6], 0
    %16 = vsyncpa [#allocation4], 0
    %s17 = scalar_lea.sflag [#allocation4], 1
    %18 = vsyncpa %s17, 0
    loop: start=0, step=1, limit=6
    $region2: #{tpu_custom_call.1} parent=1 // loop_pre_header
      _
    $region3: #{tpu_custom_call.1} parent=1 // loop_header
      %s20 = sphi 0, %s24
      %p21 = scmp.ge.s32.totalorder %s20, 6
      %s30 = sphi 0, %s32
      %s33 = sphi 0, %s30
      %s34 = sphi 0, %s33
      %s50 = sphi 0, %s34
      %s54 = sphi 0, %s54
      %s56 = sphi 0, %s54
      %s57 = sphi 0, %s56
      %s71 = sphi 0, %s57
      %s75 = sphi 0, %s75
      %s77 = sphi 0, %s75
      %s78 = sphi 0, %s77
      %s92 = sphi 0, %s78
      %s96 = sphi 0, %s96
      %s98 = sphi 0, %s96
      %s99 = sphi 0, %s98
      %s113 = sphi 0, %s99
      %s117 = sphi 0, %s117
      %s119 = sphi 0, %s117
      %s120 = sphi 0, %s119
      %s134 = sphi 0, %s120
      %s138 = sphi 0, %s138
      %s140 = sphi 0, %s138
      %s141 = sphi 0, %s140
      %s155 = sphi 0, %s141
      %s159 = sphi 0, %s159
      %s161 = sphi 0, %s159
      %s162 = sphi 0, %s161
      %s176 = sphi 0, %s162
      %s182 = sphi 0, %s184
      %s185 = sphi 0, %s182
      %s186 = sphi 0, %s185
      %s202 = sphi 0, %s186
    $region4: #{tpu_custom_call.1} parent=1 // loop_header_branch
      %23 = sbr.rel (%p21) target = $region8
    $region5: #{tpu_custom_call.1} parent=1 // loop_body
      %s25 = ssub.s32 %s20, 1
      %s26 = ssub.s32 %s20, 2
      %s27 = sadd.s32 %s20, 1
      %s28 = ssub.s32 %s20, %s27
      %p29 = scmp.eq.s32.totalorder %s28, 0
      %s31 = sadd.s32 %s30, 1
      %s32 = scalar_select %p29, %s30, %s31
      %p35 = pneg %p29
      %p36 = scmp.eq.s32.totalorder %s20, 3
      %p37 = por %p35, %p36
      %p38 = scmp.ne.s32.totalorder %s30, %s33
      %p39 = scmp.eq.s32.totalorder %s20, 0
      %p40 = por %p38, %p39
      %p41 = scmp.ne.s32.totalorder %s30, %s33
      %p42 = scmp.eq.s32.totalorder %s25, 3
      %p43 = por %p41, %p42
      %p44 = scmp.ne.s32.totalorder %s33, %s34
      %p45 = scmp.eq.s32.totalorder %s25, 0
      %p46 = por %p44, %p45
      %p47 = scmp.ne.s32.totalorder %s33, %s34
      %p48 = scmp.eq.s32.totalorder %s26, 3
      %p49 = por %p47, %p48
      %p51 = scmp.ne.s32.totalorder %s34, %s50
      %p52 = scmp.eq.s32.totalorder %s26, 0
      %p53 = por %p51, %p52
      %s55 = sadd.s32 %s54, 1
      %p58 = scmp.eq.s32.totalorder %s20, 3
      %p59 = scmp.ne.s32.totalorder %s54, %s56
      %p60 = scmp.eq.s32.totalorder %s20, 0
      %p61 = por %p59, %p60
      %p62 = scmp.ne.s32.totalorder %s54, %s56
      %p63 = scmp.eq.s32.totalorder %s25, 3
      %p64 = por %p62, %p63
      %p65 = scmp.ne.s32.totalorder %s56, %s57
      %p66 = scmp.eq.s32.totalorder %s25, 0
      %p67 = por %p65, %p66
      %p68 = scmp.ne.s32.totalorder %s56, %s57
      %p69 = scmp.eq.s32.totalorder %s26, 3
      %p70 = por %p68, %p69
      %p72 = scmp.ne.s32.totalorder %s57, %s71
      %p73 = scmp.eq.s32.totalorder %s26, 0
      %p74 = por %p72, %p73
      %s76 = sadd.s32 %s75, 1
      %p79 = scmp.eq.s32.totalorder %s20, 3
      %p80 = scmp.ne.s32.totalorder %s75, %s77
      %p81 = scmp.eq.s32.totalorder %s20, 0
      %p82 = por %p80, %p81
      %p83 = scmp.ne.s32.totalorder %s75, %s77
      %p84 = scmp.eq.s32.totalorder %s25, 3
      %p85 = por %p83, %p84
      %p86 = scmp.ne.s32.totalorder %s77, %s78
      %p87 = scmp.eq.s32.totalorder %s25, 0
      %p88 = por %p86, %p87
      %p89 = scmp.ne.s32.totalorder %s77, %s78
      %p90 = scmp.eq.s32.totalorder %s26, 3
      %p91 = por %p89, %p90
      %p93 = scmp.ne.s32.totalorder %s78, %s92
      %p94 = scmp.eq.s32.totalorder %s26, 0
      %p95 = por %p93, %p94
      %s97 = sadd.s32 %s96, 1
      %p100 = scmp.eq.s32.totalorder %s20, 3
      %p101 = scmp.ne.s32.totalorder %s96, %s98
      %p102 = scmp.eq.s32.totalorder %s20, 0
      %p103 = por %p101, %p102
      %p104 = scmp.ne.s32.totalorder %s96, %s98
      %p105 = scmp.eq.s32.totalorder %s25, 3
      %p106 = por %p104, %p105
      %p107 = scmp.ne.s32.totalorder %s98, %s99
      %p108 = scmp.eq.s32.totalorder %s25, 0
      %p109 = por %p107, %p108
      %p110 = scmp.ne.s32.totalorder %s98, %s99
      %p111 = scmp.eq.s32.totalorder %s26, 3
      %p112 = por %p110, %p111
      %p114 = scmp.ne.s32.totalorder %s99, %s113
      %p115 = scmp.eq.s32.totalorder %s26, 0
      %p116 = por %p114, %p115
      %s118 = sadd.s32 %s117, 1
      %p121 = scmp.eq.s32.totalorder %s20, 3
      %p122 = scmp.ne.s32.totalorder %s117, %s119
      %p123 = scmp.eq.s32.totalorder %s20, 0
      %p124 = por %p122, %p123
      %p125 = scmp.ne.s32.totalorder %s117, %s119
      %p126 = scmp.eq.s32.totalorder %s25, 3
      %p127 = por %p125, %p126
      %p128 = scmp.ne.s32.totalorder %s119, %s120
      %p129 = scmp.eq.s32.totalorder %s25, 0
      %p130 = por %p128, %p129
      %p131 = scmp.ne.s32.totalorder %s119, %s120
      %p132 = scmp.eq.s32.totalorder %s26, 3
      %p133 = por %p131, %p132
      %p135 = scmp.ne.s32.totalorder %s120, %s134
      %p136 = scmp.eq.s32.totalorder %s26, 0
      %p137 = por %p135, %p136
      %s139 = sadd.s32 %s138, 1
      %p142 = scmp.eq.s32.totalorder %s20, 3
      %p143 = scmp.ne.s32.totalorder %s138, %s140
      %p144 = scmp.eq.s32.totalorder %s20, 0
      %p145 = por %p143, %p144
      %p146 = scmp.ne.s32.totalorder %s138, %s140
      %p147 = scmp.eq.s32.totalorder %s25, 3
      %p148 = por %p146, %p147
      %p149 = scmp.ne.s32.totalorder %s140, %s141
      %p150 = scmp.eq.s32.totalorder %s25, 0
      %p151 = por %p149, %p150
      %p152 = scmp.ne.s32.totalorder %s140, %s141
      %p153 = scmp.eq.s32.totalorder %s26, 3
      %p154 = por %p152, %p153
      %p156 = scmp.ne.s32.totalorder %s141, %s155
      %p157 = scmp.eq.s32.totalorder %s26, 0
      %p158 = por %p156, %p157
      %s160 = sadd.s32 %s159, 1
      %p163 = scmp.eq.s32.totalorder %s20, 3
      %p164 = scmp.ne.s32.totalorder %s159, %s161
      %p165 = scmp.eq.s32.totalorder %s20, 0
      %p166 = por %p164, %p165
      %p167 = scmp.ne.s32.totalorder %s159, %s161
      %p168 = scmp.eq.s32.totalorder %s25, 3
      %p169 = por %p167, %p168
      %p170 = scmp.ne.s32.totalorder %s161, %s162
      %p171 = scmp.eq.s32.totalorder %s25, 0
      %p172 = por %p170, %p171
      %p173 = scmp.ne.s32.totalorder %s161, %s162
      %p174 = scmp.eq.s32.totalorder %s26, 3
      %p175 = por %p173, %p174
      %p177 = scmp.ne.s32.totalorder %s162, %s176
      %p178 = scmp.eq.s32.totalorder %s26, 0
      %p179 = por %p177, %p178
      %s180 = ssub.s32 %s20, %s27
      %p181 = scmp.eq.s32.totalorder %s180, 0
      %s183 = sadd.s32 %s182, 1
      %s184 = scalar_select %p181, %s182, %s183
      %p187 = pneg %p181
      %p188 = scmp.eq.s32.totalorder %s20, 3
      %p189 = por %p187, %p188
      %p190 = scmp.ne.s32.totalorder %s182, %s185
      %p191 = scmp.eq.s32.totalorder %s20, 0
      %p192 = por %p190, %p191
      %p193 = scmp.ne.s32.totalorder %s182, %s185
      %p194 = scmp.eq.s32.totalorder %s25, 3
      %p195 = por %p193, %p194
      %p196 = scmp.ne.s32.totalorder %s185, %s186
      %p197 = scmp.eq.s32.totalorder %s25, 0
      %p198 = por %p196, %p197
      %p199 = scmp.ne.s32.totalorder %s185, %s186
      %p200 = scmp.eq.s32.totalorder %s26, 3
      %p201 = por %p199, %p200
      %p203 = scmp.ne.s32.totalorder %s186, %s202
      %p204 = scmp.eq.s32.totalorder %s26, 0
      %p205 = por %p203, %p204
      %p206 = scmp.le.s32.totalorder 1, %s20
      %p207 = scmp.lt.s32.totalorder %s20, 5
      %p208 = pnand %p206, %p207
      %p209 = pneg %p208
      // Predicated region
      $region9: #{tpu_custom_call.1} parent=5 // pred_check
        _
      $region10: #{tpu_custom_call.1} parent=5 // pred_check_branch
        %211 = sbr.rel (%p208) target = $region12
      $region11: #{tpu_custom_call.1} parent=5 // pred_region
        %s212 = ssub.s32 %s20, 1
        // Predicated region
        $region13: #{tpu_custom_call.1} parent=11 // pred_check
          %p213 = pneg %p67
        $region14: #{tpu_custom_call.1} parent=11 // pred_check_branch
          %215 = sbr.rel (%p213) target = $region16
        $region15: #{tpu_custom_call.1} parent=11 // pred_region
          _
        $region16: #{tpu_custom_call.1} parent=11 // pred_fallthru
          _
        // Predicated region
        $region17: #{tpu_custom_call.1} parent=11 // pred_check
          %p216 = pneg %p88
        $region18: #{tpu_custom_call.1} parent=11 // pred_check_branch
          %218 = sbr.rel (%p216) target = $region20
        $region19: #{tpu_custom_call.1} parent=11 // pred_region
          _
        $region20: #{tpu_custom_call.1} parent=11 // pred_fallthru
          _
        // Predicated region
        $region21: #{tpu_custom_call.1} parent=11 // pred_check
          %p219 = pneg %p109
        $region22: #{tpu_custom_call.1} parent=11 // pred_check_branch
          %221 = sbr.rel (%p219) target = $region24
        $region23: #{tpu_custom_call.1} parent=11 // pred_region
          %s223 = ssub.s32 2048, 2048
          %224 = vsyncadd [#allocation6], %s223
          %s225 = sshll.u32 [#allocation5], 4
          %s226 = int_to_ptr.vmem [resolvable:$true] %s225
          %231 = dma.hbm_to_vmem [thread:$0]  %s3, 2048, %s226, [#allocation6], 128, 128, 8
        $region24: #{tpu_custom_call.1} parent=11 // pred_fallthru
          _
        // Predicated region
        $region25: #{tpu_custom_call.1} parent=11 // pred_check
          %p232 = pneg %p130
        $region26: #{tpu_custom_call.1} parent=11 // pred_check_branch
          %234 = sbr.rel (%p232) target = $region28
        $region27: #{tpu_custom_call.1} parent=11 // pred_region
          _
        $region28: #{tpu_custom_call.1} parent=11 // pred_fallthru
          _
        // Predicated region
        $region29: #{tpu_custom_call.1} parent=11 // pred_check
          %p235 = pneg %p151
        $region30: #{tpu_custom_call.1} parent=11 // pred_check_branch
          %237 = sbr.rel (%p235) target = $region32
        $region31: #{tpu_custom_call.1} parent=11 // pred_region
          %s239 = ssub.s32 2048, 2048
          %240 = vsyncadd [#allocation6], %s239
          %s241 = sshll.u32 [#allocation7], 4
          %s242 = int_to_ptr.vmem [resolvable:$true] %s241
          %247 = dma.hbm_to_vmem [thread:$0]  %s5, 2048, %s242, [#allocation6], 64, 64, 4
        $region32: #{tpu_custom_call.1} parent=11 // pred_fallthru
          _
        // Predicated region
        $region33: #{tpu_custom_call.1} parent=11 // pred_check
          %p248 = pneg %p172
        $region34: #{tpu_custom_call.1} parent=11 // pred_check_branch
          %250 = sbr.rel (%p248) target = $region36
        $region35: #{tpu_custom_call.1} parent=11 // pred_region
          _
        $region36: #{tpu_custom_call.1} parent=11 // pred_fallthru
          _
      $region12: #{tpu_custom_call.1} parent=5 // pred_fallthru
        _
      %p251 = scmp.lt.s32.totalorder %s20, 4
      // Predicated region
      $region37: #{tpu_custom_call.1} parent=5 // pred_check
        %p252 = pneg %p251
      $region38: #{tpu_custom_call.1} parent=5 // pred_check_branch
        %254 = sbr.rel (%p252) target = $region40
      $region39: #{tpu_custom_call.1} parent=5 // pred_region
        // Predicated region
        $region41: #{tpu_custom_call.1} parent=39 // pred_check
          %p255 = pneg %p40
        $region42: #{tpu_custom_call.1} parent=39 // pred_check_branch
          %257 = sbr.rel (%p255) target = $region44
        $region43: #{tpu_custom_call.1} parent=39 // pred_region
          %s258 = sand.u32 %s30, 1
          %s259 = scalar_lea.sflag [#allocation3], %s258
          %s260 = sand.u32 %s30, 1
          %s261 = smul.addr %s260, 64
          %s262 = scalar_lea.vmem [#allocation2], %s261
          %s263 = smul.u32 8, %s20
          %s265 = ssub.s32 1024, 1024
          %266 = vsyncadd %s259, %s265
          %s267 = smul.addr %s263, 128
          %s268 = scalar_lea.hbm %s0, %s267
          %s269 = sshll.u32 %s262, 4
          %s270 = int_to_ptr.vmem [resolvable:$true] %s269
          %275 = dma.hbm_to_vmem [thread:$0]  %s268, 1024, %s270, %s259, 128, 128, 8
        $region44: #{tpu_custom_call.1} parent=39 // pred_fallthru
          _
      $region40: #{tpu_custom_call.1} parent=5 // pred_fallthru
        _
      %p276 = scmp.le.s32.totalorder 1, %s20
      %p277 = scmp.lt.s32.totalorder %s20, 5
      %p278 = pnand %p276, %p277
      %p279 = pneg %p278
      // Predicated region
      $region45: #{tpu_custom_call.1} parent=5 // pred_check
        _
      $region46: #{tpu_custom_call.1} parent=5 // pred_check_branch
        %281 = sbr.rel (%p278) target = $region48
      $region47: #{tpu_custom_call.1} parent=5 // pred_region
        %s282 = ssub.s32 %s20, 1
        %s283 = sand.u32 %s33, 1
        %s284 = scalar_lea.sflag [#allocation3], %s283
        %s285 = sand.u32 %s33, 1
        %s286 = smul.addr %s285, 64
        %s287 = scalar_lea.vmem [#allocation2], %s286
        // Predicated region
        $region49: #{tpu_custom_call.1} parent=47 // pred_check
          %p288 = pneg %p46
        $region50: #{tpu_custom_call.1} parent=47 // pred_check_branch
          %290 = sbr.rel (%p288) target = $region52
        $region51: #{tpu_custom_call.1} parent=47 // pred_region
          %291 = dma.done %s284, 1024
        $region52: #{tpu_custom_call.1} parent=47 // pred_fallthru
          _
        // Predicated region
        $region53: #{tpu_custom_call.1} parent=47 // pred_check
          %p292 = pneg %p109
        $region54: #{tpu_custom_call.1} parent=47 // pred_check_branch
          %294 = sbr.rel (%p292) target = $region56
        $region55: #{tpu_custom_call.1} parent=47 // pred_region
          %295 = dma.done [#allocation6], 2048
        $region56: #{tpu_custom_call.1} parent=47 // pred_fallthru
          _
        // Predicated region
        $region57: #{tpu_custom_call.1} parent=47 // pred_check
          %p296 = pneg %p151
        $region58: #{tpu_custom_call.1} parent=47 // pred_check_branch
          %298 = sbr.rel (%p296) target = $region60
        $region59: #{tpu_custom_call.1} parent=47 // pred_region
          %299 = dma.done [#allocation6], 2048
        $region60: #{tpu_custom_call.1} parent=47 // pred_fallthru
          _
        %s300 = sand.u32 %s33, 1
        %s301 = scalar_lea.sflag [#allocation3], %s300
        %s302 = sand.u32 %s33, 1
        %s303 = smul.addr %s302, 64
        %s304 = scalar_lea.vmem [#allocation2], %s303
        %p305 = pneg %p46
        %p306 = pneg %p43
        %p307 = pneg %p67
        %p308 = pneg %p64
        %p309 = pneg %p88
        %p310 = pneg %p85
        %p311 = pneg %p109
        %p312 = pneg %p106
        %p313 = pneg %p130
        %p314 = pneg %p127
        %p315 = pneg %p151
        %p316 = pneg %p148
        %p317 = pneg %p172
        %p318 = pneg %p169
        %p319 = pneg %p198
        %p320 = pneg %p195
        %s321 = sand.u32 %s185, 1
        %s322 = scalar_lea.sflag [#allocation4], %s321
        %s323 = sand.u32 %s185, 1
        %s324 = smul.addr %s323, 64
        %s325 = scalar_lea.vmem [#allocation8], %s324
        %s326 = smul.u32 8, %s25
        %s327 = smul.u32 8, %s25
        %v329 = vld [vmem:[%s287] sm:$0xff]
        %v330 = vld [vmem:[%s287 + $0x8] sm:$0xff]
        %v331 = vld [vmem:[%s287 + $0x10] sm:$0xff]
        %v332 = vld [vmem:[%s287 + $0x18] sm:$0xff]
        %v333 = vld [vmem:[%s287 + $0x20] sm:$0xff]
        %v334 = vld [vmem:[%s287 + $0x28] sm:$0xff]
        %v335 = vld [vmem:[%s287 + $0x30] sm:$0xff]
        %v336 = vld [vmem:[%s287 + $0x38] sm:$0xff]
        %337 = vadd.xlane.f32.xlu0 %v329
        %v338 = vpop.xlane.xlu0 %337
        %339 = vadd.xlane.f32.xlu0 %v330
        %v340 = vpop.xlane.xlu0 %339
        %341 = vadd.xlane.f32.xlu0 %v331
        %v342 = vpop.xlane.xlu0 %341
        %343 = vadd.xlane.f32.xlu0 %v332
        %v344 = vpop.xlane.xlu0 %343
        %345 = vadd.xlane.f32.xlu0 %v333
        %v346 = vpop.xlane.xlu0 %345
        %347 = vadd.xlane.f32.xlu0 %v334
        %v348 = vpop.xlane.xlu0 %347
        %349 = vadd.xlane.f32.xlu0 %v335
        %v350 = vpop.xlane.xlu0 %349
        %351 = vadd.xlane.f32.xlu0 %v336
        %v352 = vpop.xlane.xlu0 %351
        %v353 = vrcp.pop 128.0
        %v354 = vmul.f32 %v338, %v353
        %v355 = vmul.f32 %v340, %v353
        %v356 = vmul.f32 %v342, %v353
        %v357 = vmul.f32 %v344, %v353
        %v358 = vmul.f32 %v346, %v353
        %v359 = vmul.f32 %v348, %v353
        %v360 = vmul.f32 %v350, %v353
        %v361 = vmul.f32 %v352, %v353
        %v362 = vsub.f32 %v329, %v354
        %v363 = vsub.f32 %v330, %v355
        %v364 = vsub.f32 %v331, %v356
        %v365 = vsub.f32 %v332, %v357
        %v366 = vsub.f32 %v333, %v358
        %v367 = vsub.f32 %v334, %v359
        %v368 = vsub.f32 %v335, %v360
        %v369 = vsub.f32 %v336, %v361
        %v370 = vmul.f32 %v362, %v362
        %v371 = vmul.f32 %v363, %v363
        %v372 = vmul.f32 %v364, %v364
        %v373 = vmul.f32 %v365, %v365
        %v374 = vmul.f32 %v366, %v366
        %v375 = vmul.f32 %v367, %v367
        %v376 = vmul.f32 %v368, %v368
        %v377 = vmul.f32 %v369, %v369
        %378 = vadd.xlane.f32.xlu0 %v370
        %v379 = vpop.xlane.xlu0 %378
        %380 = vadd.xlane.f32.xlu0 %v371
        %v381 = vpop.xlane.xlu0 %380
        %382 = vadd.xlane.f32.xlu0 %v372
        %v383 = vpop.xlane.xlu0 %382
        %384 = vadd.xlane.f32.xlu0 %v373
        %v385 = vpop.xlane.xlu0 %384
        %386 = vadd.xlane.f32.xlu0 %v374
        %v387 = vpop.xlane.xlu0 %386
        %388 = vadd.xlane.f32.xlu0 %v375
        %v389 = vpop.xlane.xlu0 %388
        %390 = vadd.xlane.f32.xlu0 %v376
        %v391 = vpop.xlane.xlu0 %390
        %392 = vadd.xlane.f32.xlu0 %v377
        %v393 = vpop.xlane.xlu0 %392
        %v394 = vmul.f32 %v379, %v353
        %v395 = vmul.f32 %v381, %v353
        %v396 = vmul.f32 %v383, %v353
        %v397 = vmul.f32 %v385, %v353
        %v398 = vmul.f32 %v387, %v353
        %v399 = vmul.f32 %v389, %v353
        %v400 = vmul.f32 %v391, %v353
        %v401 = vmul.f32 %v393, %v353
        %v402 = vld [vmem:[%s1] sm:$0x1]
        %v403 = vadd.f32 %v394, 1e-05
        %v404 = vadd.f32 %v395, 1e-05
        %v405 = vadd.f32 %v396, 1e-05
        %v406 = vadd.f32 %v397, 1e-05
        %v407 = vadd.f32 %v398, 1e-05
        %v408 = vadd.f32 %v399, 1e-05
        %v409 = vadd.f32 %v400, 1e-05
        %v410 = vadd.f32 %v401, 1e-05
        %v411 = vrsqrt.pop %v403
        %v412 = vrsqrt.pop %v404
        %v413 = vrsqrt.pop %v405
        %v414 = vrsqrt.pop %v406
        %v415 = vrsqrt.pop %v407
        %v416 = vrsqrt.pop %v408
        %v417 = vrsqrt.pop %v409
        %v418 = vrsqrt.pop %v410
        %v420 = vlaneseq
        %v421 = vshrl.u32 %v420, 7
        %v422 = vsub.s32 0, %v421
        %v423 = vrot.slane %v402, %v422
        %v425 = vmul.f32 %v423, %v411
        %v426 = vmul.f32 %v423, %v412
        %v427 = vmul.f32 %v423, %v413
        %v428 = vmul.f32 %v423, %v414
        %v429 = vmul.f32 %v423, %v415
        %v430 = vmul.f32 %v423, %v416
        %v431 = vmul.f32 %v423, %v417
        %v432 = vmul.f32 %v423, %v418
        %v433 = vmul.f32 %v362, %v425
        %v434 = vmul.f32 %v363, %v426
        %v435 = vmul.f32 %v364, %v427
        %v436 = vmul.f32 %v365, %v428
        %v437 = vmul.f32 %v366, %v429
        %v438 = vmul.f32 %v367, %v430
        %v439 = vmul.f32 %v368, %v431
        %v440 = vmul.f32 %v369, %v432
        %v441 = vld [vmem:[%s2] sm:$0x1]
        %v443 = vlaneseq
        %v444 = vshrl.u32 %v443, 7
        %v445 = vsub.s32 0, %v444
        %v446 = vrot.slane %v441, %v445
        %v448 = vadd.f32 %v433, %v446
        %v449 = vadd.f32 %v434, %v446
        %v450 = vadd.f32 %v435, %v446
        %v451 = vadd.f32 %v436, %v446
        %v452 = vadd.f32 %v437, %v446
        %v453 = vadd.f32 %v438, %v446
        %v454 = vadd.f32 %v439, %v446
        %v455 = vadd.f32 %v440, %v446
        %v456 = vpack.c.bf16 %v449, %v448
        %v457 = vpack.c.bf16 %v451, %v450
        %v458 = vpack.c.bf16 %v453, %v452
        %v459 = vpack.c.bf16 %v455, %v454
        %v460 = vld [vmem:[#allocation5] sm:$0xff]
        %v461 = vld [vmem:[#allocation5 + $0x8] sm:$0xff]
        %v462 = vld [vmem:[#allocation5 + $0x10] sm:$0xff]
        %v463 = vld [vmem:[#allocation5 + $0x18] sm:$0xff]
        %v464 = vld [vmem:[#allocation5 + $0x20] sm:$0xff]
        %v465 = vld [vmem:[#allocation5 + $0x28] sm:$0xff]
        %v466 = vld [vmem:[#allocation5 + $0x30] sm:$0xff]
        %v467 = vld [vmem:[#allocation5 + $0x38] sm:$0xff]
        %v468 = vld [vmem:[#allocation5 + $0x40] sm:$0xff]
        %v469 = vld [vmem:[#allocation5 + $0x48] sm:$0xff]
        %v470 = vld [vmem:[#allocation5 + $0x50] sm:$0xff]
        %v471 = vld [vmem:[#allocation5 + $0x58] sm:$0xff]
        %v472 = vld [vmem:[#allocation5 + $0x60] sm:$0xff]
        %v473 = vld [vmem:[#allocation5 + $0x68] sm:$0xff]
        %v474 = vld [vmem:[#allocation5 + $0x70] sm:$0xff]
        %v475 = vld [vmem:[#allocation5 + $0x78] sm:$0xff]
        %v476 = vld [vmem:[%s4] sm:$0x3]
        %v478 = vlaneseq
        %v479 = vshrl.u32 %v478, 7
        %v480 = vsub.s32 0, %v479
        %v481 = vrot.slane %v476, %v480
        %v482 = vlaneseq
        %v483 = vshrl.u32 %v482, 7
        %v484 = vsub.s32 1, %v483
        %v485 = vrot.slane %v476, %v484
        %v504 = vunpack.c.l.b16 %v460
        %v505 = vunpack.c.h.b16 %v460
        %v506 = vunpack.c.l.b16 %v461
        %v507 = vunpack.c.h.b16 %v461
        %v508 = vunpack.c.l.b16 %v462
        %v509 = vunpack.c.h.b16 %v462
        %v510 = vunpack.c.l.b16 %v463
        %v511 = vunpack.c.h.b16 %v463
        %v512 = vunpack.c.l.b16 %v464
        %v513 = vunpack.c.h.b16 %v464
        %v514 = vunpack.c.l.b16 %v465
        %v515 = vunpack.c.h.b16 %v465
        %v516 = vunpack.c.l.b16 %v466
        %v517 = vunpack.c.h.b16 %v466
        %v518 = vunpack.c.l.b16 %v467
        %v519 = vunpack.c.h.b16 %v467
        %v520 = vunpack.c.l.b16 %v468
        %v521 = vunpack.c.h.b16 %v468
        %v522 = vunpack.c.l.b16 %v469
        %v523 = vunpack.c.h.b16 %v469
        %v524 = vunpack.c.l.b16 %v470
        %v525 = vunpack.c.h.b16 %v470
        %v526 = vunpack.c.l.b16 %v471
        %v527 = vunpack.c.h.b16 %v471
        %v528 = vunpack.c.l.b16 %v472
        %v529 = vunpack.c.h.b16 %v472
        %v530 = vunpack.c.l.b16 %v473
        %v531 = vunpack.c.h.b16 %v473
        %v532 = vunpack.c.l.b16 %v474
        %v533 = vunpack.c.h.b16 %v474
        %v534 = vunpack.c.l.b16 %v475
        %v535 = vunpack.c.h.b16 %v475
        %v536 = vpack.c.b16 %v506, %v504
        %v537 = vpack.c.b16 %v507, %v505
        %v538 = vpack.c.b16 %v510, %v508
        %v539 = vpack.c.b16 %v511, %v509
        %v540 = vpack.c.b16 %v514, %v512
        %v541 = vpack.c.b16 %v515, %v513
        %v542 = vpack.c.b16 %v518, %v516
        %v543 = vpack.c.b16 %v519, %v517
        %v544 = vpack.c.b16 %v522, %v520
        %v545 = vpack.c.b16 %v523, %v521
        %v546 = vpack.c.b16 %v526, %v524
        %v547 = vpack.c.b16 %v527, %v525
        %v548 = vpack.c.b16 %v530, %v528
        %v549 = vpack.c.b16 %v531, %v529
        %v550 = vpack.c.b16 %v534, %v532
        %v551 = vpack.c.b16 %v535, %v533
        %568 = vmatprep.subr.bf16.mxu0 %v537
        %569 = vmatpush1.bf16.msra.mxu0 %v536
        %570 = vmatprep.subr.bf16.mxu0 %v539
        %571 = vmatpush1.bf16.msra.mxu0 %v538
        %572 = vmatprep.subr.bf16.mxu0 %v541
        %573 = vmatpush1.bf16.msra.mxu0 %v540
        %574 = vmatprep.subr.bf16.mxu0 %v543
        %575 = vmatpush1.bf16.msra.mxu0 %v542
        %576 = vmatprep.subr.bf16.mxu0 %v545
        %577 = vmatpush1.bf16.msra.mxu0 %v544
        %578 = vmatprep.subr.bf16.mxu0 %v547
        %579 = vmatpush1.bf16.msra.mxu0 %v546
        %580 = vmatprep.subr.bf16.mxu0 %v549
        %581 = vmatpush1.bf16.msra.mxu0 %v548
        %582 = vmatprep.subr.bf16.mxu0 %v551
        %583 = vmatpush1.bf16.msra.mxu0 %v550
        %584 = vmatprep.subr.bf16.mxu0 0
        %585 = vmatpush1.bf16.msra.mxu0 0
        %586 = vmatprep.subr.bf16.mxu0 0
        %587 = vmatpush1.bf16.msra.mxu0 0
        %588 = vmatprep.subr.bf16.mxu0 0
        %589 = vmatpush1.bf16.msra.mxu0 0
        %590 = vmatprep.subr.bf16.mxu0 0
        %591 = vmatpush1.bf16.msra.mxu0 0
        %592 = vmatprep.subr.bf16.mxu0 0
        %593 = vmatpush1.bf16.msra.mxu0 0
        %594 = vmatprep.subr.bf16.mxu0 0
        %595 = vmatpush1.bf16.msra.mxu0 0
        %596 = vmatprep.subr.bf16.mxu0 0
        %597 = vmatpush1.bf16.msra.mxu0 0
        %598 = vmatprep.subr.bf16.mxu0 0
        %599 = vmatpush1.bf16.msra.mxu0 0
        %600 = vmatprep.mubr.bf16.mxu0 0
        %601 = vmatmul.mubr.bf16.gmra.mrb[0].mxu0 %v456
        %v602 = vpop.f32.mrb[0].mxu0
        %v603 = vadd.f32 %v481, %v602
        %v604 = vpop.f32.mrb[0].mxu0
        %v605 = vadd.f32 %v485, %v604
        %v606 = vpop.f32.mrb[0].mxu0
        %v607 = vadd.f32 %v481, %v606
        %v608 = vpop.f32.mrb[0].mxu0
        %v609 = vadd.f32 %v485, %v608
        %610 = vmatprep.mubr.bf16.mxu0 0
        %611 = vmatmul.mubr.bf16.gmra.mrb[0].mxu0 %v457
        %v612 = vpop.f32.mrb[0].mxu0
        %v613 = vadd.f32 %v481, %v612
        %v614 = vpop.f32.mrb[0].mxu0
        %v615 = vadd.f32 %v485, %v614
        %v616 = vpop.f32.mrb[0].mxu0
        %v617 = vadd.f32 %v481, %v616
        %v618 = vpop.f32.mrb[0].mxu0
        %v619 = vadd.f32 %v485, %v618
        %620 = vmatprep.mubr.bf16.mxu0 0
        %621 = vmatmul.mubr.bf16.gmra.mrb[0].mxu0 %v458
        %v622 = vpop.f32.mrb[0].mxu0
        %v623 = vadd.f32 %v481, %v622
        %v624 = vpop.f32.mrb[0].mxu0
        %v625 = vadd.f32 %v485, %v624
        %v626 = vpop.f32.mrb[0].mxu0
        %v627 = vadd.f32 %v481, %v626
        %v628 = vpop.f32.mrb[0].mxu0
        %v629 = vadd.f32 %v485, %v628
        %630 = vmatprep.mubr.bf16.mxu0 0
        %631 = vmatmul.mubr.bf16.gmra.mrb[0].mxu0 %v459
        %v632 = vpop.f32.mrb[0].mxu0
        %v633 = vadd.f32 %v481, %v632
        %v634 = vpop.f32.mrb[0].mxu0
        %v635 = vadd.f32 %v485, %v634
        %v636 = vpop.f32.mrb[0].mxu0
        %v637 = vadd.f32 %v481, %v636
        %v638 = vpop.f32.mrb[0].mxu0
        %v639 = vadd.f32 %v485, %v638
        %640 = vdwg.mxu0
        %v641 = vmax.f32 %v603, 0.0
        %v642 = vmax.f32 %v605, 0.0
        %v643 = vmax.f32 %v607, 0.0
        %v644 = vmax.f32 %v609, 0.0
        %v645 = vmax.f32 %v613, 0.0
        %v646 = vmax.f32 %v615, 0.0
        %v647 = vmax.f32 %v617, 0.0
        %v648 = vmax.f32 %v619, 0.0
        %v649 = vmax.f32 %v623, 0.0
        %v650 = vmax.f32 %v625, 0.0
        %v651 = vmax.f32 %v627, 0.0
        %v652 = vmax.f32 %v629, 0.0
        %v653 = vmax.f32 %v633, 0.0
        %v654 = vmax.f32 %v635, 0.0
        %v655 = vmax.f32 %v637, 0.0
        %v656 = vmax.f32 %v639, 0.0
        %v657 = vpack.c.bf16 %v643, %v641
        %v658 = vpack.c.bf16 %v644, %v642
        %v659 = vpack.c.bf16 %v647, %v645
        %v660 = vpack.c.bf16 %v648, %v646
        %v661 = vpack.c.bf16 %v651, %v649
        %v662 = vpack.c.bf16 %v652, %v650
        %v663 = vpack.c.bf16 %v655, %v653
        %v664 = vpack.c.bf16 %v656, %v654
        %v665 = vld [vmem:[#allocation7] sm:$0xf]
        %v666 = vld [vmem:[#allocation7 + $0x4] sm:$0xf]
        %v667 = vld [vmem:[#allocation7 + $0x8] sm:$0xf]
        %v668 = vld [vmem:[#allocation7 + $0xc] sm:$0xf]
        %v669 = vld [vmem:[#allocation7 + $0x10] sm:$0xf]
        %v670 = vld [vmem:[#allocation7 + $0x14] sm:$0xf]
        %v671 = vld [vmem:[#allocation7 + $0x18] sm:$0xf]
        %v672 = vld [vmem:[#allocation7 + $0x1c] sm:$0xf]
        %v673 = vld [vmem:[#allocation7 + $0x20] sm:$0xf]
        %v674 = vld [vmem:[#allocation7 + $0x24] sm:$0xf]
        %v675 = vld [vmem:[#allocation7 + $0x28] sm:$0xf]
        %v676 = vld [vmem:[#allocation7 + $0x2c] sm:$0xf]
        %v677 = vld [vmem:[#allocation7 + $0x30] sm:$0xf]
        %v678 = vld [vmem:[#allocation7 + $0x34] sm:$0xf]
        %v679 = vld [vmem:[#allocation7 + $0x38] sm:$0xf]
        %v680 = vld [vmem:[#allocation7 + $0x3c] sm:$0xf]
        %v681 = vld [vmem:[#allocation7 + $0x40] sm:$0xf]
        %v682 = vld [vmem:[#allocation7 + $0x44] sm:$0xf]
        %v683 = vld [vmem:[#allocation7 + $0x48] sm:$0xf]
        %v684 = vld [vmem:[#allocation7 + $0x4c] sm:$0xf]
        %v685 = vld [vmem:[#allocation7 + $0x50] sm:$0xf]
        %v686 = vld [vmem:[#allocation7 + $0x54] sm:$0xf]
        %v687 = vld [vmem:[#allocation7 + $0x58] sm:$0xf]
        %v688 = vld [vmem:[#allocation7 + $0x5c] sm:$0xf]
        %v689 = vld [vmem:[#allocation7 + $0x60] sm:$0xf]
        %v690 = vld [vmem:[#allocation7 + $0x64] sm:$0xf]
        %v691 = vld [vmem:[#allocation7 + $0x68] sm:$0xf]
        %v692 = vld [vmem:[#allocation7 + $0x6c] sm:$0xf]
        %v693 = vld [vmem:[#allocation7 + $0x70] sm:$0xf]
        %v694 = vld [vmem:[#allocation7 + $0x74] sm:$0xf]
        %v695 = vld [vmem:[#allocation7 + $0x78] sm:$0xf]
        %v696 = vld [vmem:[#allocation7 + $0x7c] sm:$0xf]
        %v697 = vld [vmem:[%s6] sm:$0x1]
        %v699 = vlaneseq
        %v700 = vshrl.u32 %v699, 7
        %v701 = vsub.s32 0, %v700
        %v702 = vrot.slane %v697, %v701
        %v736 = vunpack.c.l.b16 %v665
        %v737 = vunpack.c.l.b16 %v666
        %v738 = vunpack.c.l.b16 %v667
        %v739 = vunpack.c.l.b16 %v668
        %v740 = vunpack.c.l.b16 %v669
        %v741 = vunpack.c.l.b16 %v670
        %v742 = vunpack.c.l.b16 %v671
        %v743 = vunpack.c.l.b16 %v672
        %v744 = vunpack.c.l.b16 %v673
        %v745 = vunpack.c.l.b16 %v674
        %v746 = vunpack.c.l.b16 %v675
        %v747 = vunpack.c.l.b16 %v676
        %v748 = vunpack.c.l.b16 %v677
        %v749 = vunpack.c.l.b16 %v678
        %v750 = vunpack.c.l.b16 %v679
        %v751 = vunpack.c.l.b16 %v680
        %v752 = vunpack.c.l.b16 %v681
        %v753 = vunpack.c.l.b16 %v682
        %v754 = vunpack.c.l.b16 %v683
        %v755 = vunpack.c.l.b16 %v684
        %v756 = vunpack.c.l.b16 %v685
        %v757 = vunpack.c.l.b16 %v686
        %v758 = vunpack.c.l.b16 %v687
        %v759 = vunpack.c.l.b16 %v688
        %v760 = vunpack.c.l.b16 %v689
        %v761 = vunpack.c.l.b16 %v690
        %v762 = vunpack.c.l.b16 %v691
        %v763 = vunpack.c.l.b16 %v692
        %v764 = vunpack.c.l.b16 %v693
        %v765 = vunpack.c.l.b16 %v694
        %v766 = vunpack.c.l.b16 %v695
        %v767 = vunpack.c.l.b16 %v696
        %v768 = vpack.c.b16 %v737, %v736
        %v769 = vpack.c.b16 %v739, %v738
        %v770 = vpack.c.b16 %v741, %v740
        %v771 = vpack.c.b16 %v743, %v742
        %v772 = vpack.c.b16 %v745, %v744
        %v773 = vpack.c.b16 %v747, %v746
        %v774 = vpack.c.b16 %v749, %v748
        %v775 = vpack.c.b16 %v751, %v750
        %v776 = vpack.c.b16 %v753, %v752
        %v777 = vpack.c.b16 %v755, %v754
        %v778 = vpack.c.b16 %v757, %v756
        %v779 = vpack.c.b16 %v759, %v758
        %v780 = vpack.c.b16 %v761, %v760
        %v781 = vpack.c.b16 %v763, %v762
        %v782 = vpack.c.b16 %v765, %v764
        %v783 = vpack.c.b16 %v767, %v766
        %800 = vmatprep.subr.bf16.mxu0 0
        %801 = vmatpush1.bf16.msra.mxu0 %v768
        %802 = vmatprep.subr.bf16.mxu0 0
        %803 = vmatpush1.bf16.msra.mxu0 %v769
        %804 = vmatprep.subr.bf16.mxu0 0
        %805 = vmatpush1.bf16.msra.mxu0 %v770
        %806 = vmatprep.subr.bf16.mxu0 0
        %807 = vmatpush1.bf16.msra.mxu0 %v771
        %808 = vmatprep.subr.bf16.mxu0 0
        %809 = vmatpush1.bf16.msra.mxu0 %v772
        %810 = vmatprep.subr.bf16.mxu0 0
        %811 = vmatpush1.bf16.msra.mxu0 %v773
        %812 = vmatprep.subr.bf16.mxu0 0
        %813 = vmatpush1.bf16.msra.mxu0 %v774
        %814 = vmatprep.subr.bf16.mxu0 0
        %815 = vmatpush1.bf16.msra.mxu0 %v775
        %816 = vmatprep.subr.bf16.mxu0 0
        %817 = vmatpush1.bf16.msra.mxu0 %v776
        %818 = vmatprep.subr.bf16.mxu0 0
        %819 = vmatpush1.bf16.msra.mxu0 %v777
        %820 = vmatprep.subr.bf16.mxu0 0
        %821 = vmatpush1.bf16.msra.mxu0 %v778
        %822 = vmatprep.subr.bf16.mxu0 0
        %823 = vmatpush1.bf16.msra.mxu0 %v779
        %824 = vmatprep.subr.bf16.mxu0 0
        %825 = vmatpush1.bf16.msra.mxu0 %v780
        %826 = vmatprep.subr.bf16.mxu0 0
        %827 = vmatpush1.bf16.msra.mxu0 %v781
        %828 = vmatprep.subr.bf16.mxu0 0
        %829 = vmatpush1.bf16.msra.mxu0 %v782
        %830 = vmatprep.subr.bf16.mxu0 0
        %831 = vmatpush1.bf16.msra.mxu0 %v783
        %832 = vmatprep.mubr.bf16.mxu0 %v658
        %833 = vmatmul.mubr.bf16.gmra.mrb[0].mxu0 %v657
        %v834 = vpop.f32.mrb[0].mxu0
        %v835 = vadd.f32 %v702, %v834
        %v836 = vpop.f32.mrb[0].mxu0
        %v837 = vpop.f32.mrb[0].mxu0
        %v838 = vadd.f32 %v702, %v837
        %v839 = vpop.f32.mrb[0].mxu0
        %840 = vmatprep.mubr.bf16.mxu0 %v660
        %841 = vmatmul.mubr.bf16.gmra.mrb[0].mxu0 %v659
        %v842 = vpop.f32.mrb[0].mxu0
        %v843 = vadd.f32 %v702, %v842
        %v844 = vpop.f32.mrb[0].mxu0
        %v845 = vpop.f32.mrb[0].mxu0
        %v846 = vadd.f32 %v702, %v845
        %v847 = vpop.f32.mrb[0].mxu0
        %848 = vmatprep.mubr.bf16.mxu0 %v662
        %849 = vmatmul.mubr.bf16.gmra.mrb[0].mxu0 %v661
        %v850 = vpop.f32.mrb[0].mxu0
        %v851 = vadd.f32 %v702, %v850
        %v852 = vpop.f32.mrb[0].mxu0
        %v853 = vpop.f32.mrb[0].mxu0
        %v854 = vadd.f32 %v702, %v853
        %v855 = vpop.f32.mrb[0].mxu0
        %856 = vmatprep.mubr.bf16.mxu0 %v664
        %857 = vmatmul.mubr.bf16.gmra.mrb[0].mxu0 %v663
        %v858 = vpop.f32.mrb[0].mxu0
        %v859 = vadd.f32 %v702, %v858
        %v860 = vpop.f32.mrb[0].mxu0
        %v861 = vpop.f32.mrb[0].mxu0
        %v862 = vadd.f32 %v702, %v861
        %v863 = vpop.f32.mrb[0].mxu0
        %864 = vdwg.mxu0
        %v865 = vadd.f32 %v329, %v835
        %v866 = vadd.f32 %v330, %v838
        %v867 = vadd.f32 %v331, %v843
        %v868 = vadd.f32 %v332, %v846
        %v869 = vadd.f32 %v333, %v851
        %v870 = vadd.f32 %v334, %v854
        %v871 = vadd.f32 %v335, %v859
        %v872 = vadd.f32 %v336, %v862
        %873 = vst [vmem:[%s325] sm:$0xff] %v865
        %874 = vst [vmem:[%s325 + $0x8] sm:$0xff] %v866
        %875 = vst [vmem:[%s325 + $0x10] sm:$0xff] %v867
        %876 = vst [vmem:[%s325 + $0x18] sm:$0xff] %v868
        %877 = vst [vmem:[%s325 + $0x20] sm:$0xff] %v869
        %878 = vst [vmem:[%s325 + $0x28] sm:$0xff] %v870
        %879 = vst [vmem:[%s325 + $0x30] sm:$0xff] %v871
        %880 = vst [vmem:[%s325 + $0x38] sm:$0xff] %v872
        %s881 = sand.u32 %s185, 1
        %s882 = scalar_lea.sflag [#allocation4], %s881
        %s883 = sand.u32 %s185, 1
        %s884 = smul.addr %s883, 64
        %s885 = scalar_lea.vmem [#allocation8], %s884
        // Predicated region
        $region61: #{tpu_custom_call.1} parent=47 // pred_check
          %p886 = pneg %p195
        $region62: #{tpu_custom_call.1} parent=47 // pred_check_branch
          %888 = sbr.rel (%p886) target = $region64
        $region63: #{tpu_custom_call.1} parent=47 // pred_region
          %s889 = smul.u32 8, %s25
          %s891 = ssub.s32 1024, 1024
          %892 = vsyncadd %s882, %s891
          %s893 = smul.addr %s889, 128
          %s894 = scalar_lea.hbm %s7, %s893
          %s895 = sshll.u32 %s885, 4
          %s896 = int_to_ptr.vmem [resolvable:$true] %s895
          %901 = dma.vmem_to_hbm [thread:$0]  %s896, 1024, %s894, %s882, 128, 128, 8
        $region64: #{tpu_custom_call.1} parent=47 // pred_fallthru
          _
      $region48: #{tpu_custom_call.1} parent=5 // pred_fallthru
        _
      %p902 = scmp.le.s32.totalorder 2, %s20
      // Predicated region
      $region65: #{tpu_custom_call.1} parent=5 // pred_check
        %p903 = pneg %p902
      $region66: #{tpu_custom_call.1} parent=5 // pred_check_branch
        %905 = sbr.rel (%p903) target = $region68
      $region67: #{tpu_custom_call.1} parent=5 // pred_region
        %s906 = ssub.s32 %s20, 2
        // Predicated region
        $region69: #{tpu_custom_call.1} parent=67 // pred_check
          %p907 = pneg %p201
        $region70: #{tpu_custom_call.1} parent=67 // pred_check_branch
          %909 = sbr.rel (%p907) target = $region72
        $region71: #{tpu_custom_call.1} parent=67 // pred_region
          %s910 = sand.u32 %s186, 1
          %s911 = scalar_lea.sflag [#allocation4], %s910
          %s912 = sand.u32 %s186, 1
          %s913 = smul.addr %s912, 64
          %s914 = scalar_lea.vmem [#allocation8], %s913
          %915 = dma.done %s911, 1024
        $region72: #{tpu_custom_call.1} parent=67 // pred_fallthru
          _
      $region68: #{tpu_custom_call.1} parent=5 // pred_fallthru
        _
    $region6: #{tpu_custom_call.1} parent=1 // loop_footer
      %s24 = sadd.s32 1, %s20
    $region7: #{tpu_custom_call.1} parent=1 // loop_footer_branch
      %19 = sbr.rel target = $region3
    $region8: #{tpu_custom_call.1} parent=1 // loop_exit
      _
    %916 = vsyncpa [#allocation3], 1
    %s917 = scalar_lea.sflag [#allocation3], 1
    %918 = vsyncpa %s917, 1
    %919 = vsyncpa [#allocation6], 1
    %920 = vsyncpa [#allocation4], 1
    %s921 = scalar_lea.sflag [#allocation4], 1
    %922 = vsyncpa %s921, 1

</llo_original>
